<compile_context>
chip_gen: v7x
topology: tpu7x:2x2x1
jax: 0.10.0
libtpu: 0.0.40
codegen_flags: <defaults>
</compile_context>

<pallas_src>
import numpy as np
import jax
import jax.numpy as jnp
from jax import lax
from jax.experimental import pallas as pl
from jax.experimental.pallas import tpu as pltpu

LATENT_DIM = 64
HIDDEN_DIM = 128
PROFILE_LEN = 31
DEPTH_EMBED_DIM = 16
BATCH = 8


# ----------------------------------------------------------------------------
# Pallas kernel: single invocation, timestep recurrence as an in-kernel loop.
# ----------------------------------------------------------------------------
def _decoder_kernel(z_ref, zlog_ref,                 # z, hoisted latent logits
                    aw_h_ref,                        # attn_fc (hidden part)
                    cw_ref, cb_ref,                  # context_fc
                    emb_ref,                         # emb @ Win_e + b_in (padded)
                    iw_c_ref,                        # input_fc (context part)
                    w0_ref, b0_ref,                  # LSTM layer 0 (fused gates)
                    w1_ref, b1_ref,                  # LSTM layer 1 (fused gates)
                    ow_ref, ob_ref,                  # output_fc
                    out_ref,
                    h0, c0, h1, c1):
    B, P = out_ref.shape
    H = cw_ref.shape[1]

    # ---- init state / output -------------------------------------------------
    h0[...] = jnp.zeros_like(h0)
    c0[...] = jnp.zeros_like(c0)
    h1[...] = jnp.zeros_like(h1)
    c1[...] = jnp.zeros_like(c1)
    out_ref[...] = jnp.zeros_like(out_ref)

    # ---- loop-invariant loads / iotas (hoisted) -------------------------------
    z = z_ref[...]                                   # [B, L]
    z_logits = zlog_ref[...]                         # [B, L]  (z part + bias, hoisted)
    emb_all = emb_ref[...]                           # [32, H] (bias folded, padded)
    row_ids = lax.broadcasted_iota(jnp.int32, (emb_all.shape[0], 1), 0)
    col_ids = lax.broadcasted_iota(jnp.int32, (B, P), 1)

    # Fused LSTM cell: one [B, 2H] @ [2H, 4H] matmul, PyTorch gate order i,f,g,o.
    def cell(xh, c_prev, w_ref, b_ref):
        g = (jnp.dot(xh, w_ref[...], preferred_element_type=jnp.float32)
             + b_ref[...])                           # [B, 4H]
        i = jax.nn.sigmoid(g[:, 0 * H:1 * H])
        f = jax.nn.sigmoid(g[:, 1 * H:2 * H])
        gg = jnp.tanh(g[:, 2 * H:3 * H])
        o = jax.nn.sigmoid(g[:, 3 * H:4 * H])
        c_new = f * c_prev + i * gg
        h_new = o * jnp.tanh(c_new)
        return h_new, c_new

    @pl.loop(0, P)
    def _(t):
        h_last = h1[...]                             # top LSTM layer hidden = h_t[-1]

        # ---- AttentionOverLatent (latent part of logits is precomputed) -------
        logits = (jnp.dot(h_last, aw_h_ref[...],
                          preferred_element_type=jnp.float32)
                  + z_logits)                        # [B, L]
        m = jnp.max(logits, axis=-1, keepdims=True)
        e = jnp.exp(logits - m)
        attn = e * (1.0 / jnp.sum(e, axis=-1, keepdims=True))   # softmax over dim=1
        context = (jnp.dot(attn * z, cw_ref[...],
                           preferred_element_type=jnp.float32)
                   + cb_ref[...])                    # [B, H]

        # ---- depth-embedding row t: mask-select from precomputed table --------
        emb_row = jnp.sum(jnp.where(row_ids == t, emb_all, 0.0),
                          axis=0, keepdims=True)     # [1, H] (input_fc bias folded)

        # ---- input_fc(cat([depth_embed, context])) + relu ----------------------
        lstm_in = jnp.maximum(
            emb_row
            + jnp.dot(context, iw_c_ref[...], preferred_element_type=jnp.float32),
            0.0)                                     # [B, H]

        # ---- 2-layer LSTM, stepped TWICE per timestep (matches PyTorch code:
        #      first call's dropout'd output is discarded, state is kept). -------
        def lstm_step():
            h0n, c0n = cell(jnp.concatenate([lstm_in, h0[...]], axis=1),
                            c0[...], w0_ref, b0_ref)
            h1n, c1n = cell(jnp.concatenate([h0n, h1[...]], axis=1),
                            c1[...], w1_ref, b1_ref)
            h0[...] = h0n
            c0[...] = c0n
            h1[...] = h1n
            c1[...] = c1n
            return h1n

        lstm_step()
        out_h = lstm_step()                          # [B, H]

        # ---- output_fc, write column t (cheap single-vreg select) --------------
        vs = (jnp.dot(out_h, ow_ref[...], preferred_element_type=jnp.float32)
              + ob_ref[...])                         # [B, 1]
        out_ref[...] = jnp.where(col_ids == t, vs, out_ref[...])


# ----------------------------------------------------------------------------
# Wrapper: parameter plumbing + hoisted t-invariant precomputation in plain
# JAX; the serial recurrence runs in a single Pallas invocation.
# ----------------------------------------------------------------------------
@jax.jit
def latent_to_profile_decoder(z, params):
    H, L, E, P = HIDDEN_DIM, LATENT_DIM, DEPTH_EMBED_DIM, PROFILE_LEN
    B = z.shape[0]
    hp = lax.Precision.HIGHEST

    aw_h = params['attn_w'][:, :H].T                                 # [H, L]
    # Hoisted: latent part of attention logits + bias (t-invariant).
    z_logits = (jnp.dot(z, params['attn_w'][:, H:].T, precision=hp)
                + params['attn_b'][None, :])                         # [B, L]
    cw = params['ctx_w'].T                                           # [L, H]
    cb = params['ctx_b'][None, :]                                    # [1, H]
    # Hoisted: depth-embedding projection + input_fc bias, padded 31 -> 32 rows.
    emb_tab = (jnp.dot(params['emb'], params['in_w'][:, :E].T, precision=hp)
               + params['in_b'][None, :])                            # [P, H]
    emb_tab = jnp.pad(emb_tab, ((0, (-P) % 8), (0, 0)))              # [32, H]
    iw_c = params['in_w'][:, E:].T                                   # [H, H]
    # Fused LSTM gate weights: [Wih^T ; Whh^T] -> [2H, 4H], biases folded.
    w0 = jnp.concatenate([params['wih0'].T, params['whh0'].T], axis=0)
    b0 = (params['bih0'] + params['bhh0'])[None, :]                  # [1, 4H]
    w1 = jnp.concatenate([params['wih1'].T, params['whh1'].T], axis=0)
    b1 = (params['bih1'] + params['bhh1'])[None, :]
    ow = params['out_w'].T                                           # [H, 1]
    ob = params['out_b'][None, :]                                    # [1, 1]

    inputs = (z, z_logits, aw_h, cw, cb, emb_tab, iw_c,
              w0, b0, w1, b1, ow, ob)

    vmem_spec = pl.BlockSpec(memory_space=pltpu.MemorySpace.VMEM)

    out2d = pl.pallas_call(
        _decoder_kernel,
        out_shape=jax.ShapeDtypeStruct((B, P), jnp.float32),
        in_specs=[vmem_spec] * len(inputs),
        out_specs=vmem_spec,
        scratch_shapes=[pltpu.VMEM((B, H), jnp.float32)] * 4,
    )(*inputs)

    # PyTorch: stack of [B, 1] tensors along dim=1 -> [B, profile_len, 1]
    return out2d[:, :, None]


# ----------------------------------------------------------------------------
# Deterministic parameter init (PyTorch-style uniform / normal), synthetic.
# ----------------------------------------------------------------------------
def init_params(key):
    H, L, E, P = HIDDEN_DIM, LATENT_DIM, DEPTH_EMBED_DIM, PROFILE_LEN
    ks = jax.random.split(key, 20)

    def u(k, shape, fan_in):
        b = 1.0 / np.sqrt(fan_in)
        return jax.random.uniform(k, shape, jnp.float32, -b, b)

    p = {}
    p['emb'] = jax.random.normal(ks[0], (P, E), jnp.float32)         # Embedding
    p['attn_w'] = u(ks[1], (L, L + H), L + H)                        # attn_fc
    p['attn_b'] = u(ks[2], (L,), L + H)
    p['ctx_w'] = u(ks[3], (H, L), L)                                 # context_fc
    p['ctx_b'] = u(ks[4], (H,), L)
    p['in_w'] = u(ks[5], (H, E + H), E + H)                          # input_fc
    p['in_b'] = u(ks[6], (H,), E + H)
    p['wih0'] = u(ks[7], (4 * H, H), H)                              # LSTM l0
    p['whh0'] = u(ks[8], (4 * H, H), H)
    p['bih0'] = u(ks[9], (4 * H,), H)
    p['bhh0'] = u(ks[10], (4 * H,), H)
    p['wih1'] = u(ks[11], (4 * H, H), H)                             # LSTM l1
    p['whh1'] = u(ks[12], (4 * H, H), H)
    p['bih1'] = u(ks[13], (4 * H,), H)
    p['bhh1'] = u(ks[14], (4 * H,), H)
    p['out_w'] = u(ks[15], (1, H), H)                                # output_fc
    p['out_b'] = u(ks[16], (1,), H)
    return p


# ----------------------------------------------------------------------------
# Pure-JAX reference (mirrors the PyTorch forward, eval mode) for validation.
# ----------------------------------------------------------------------------
def reference_forward(z, p):
    H, L, E, P = HIDDEN_DIM, LATENT_DIM, DEPTH_EMBED_DIM, PROFILE_LEN
    B = z.shape[0]
    h0 = jnp.zeros((B, H), jnp.float32)
    c0 = jnp.zeros((B, H), jnp.float32)
    h1 = jnp.zeros((B, H), jnp.float32)
    c1 = jnp.zeros((B, H), jnp.float32)

    def cell(x, h, c, wih, whh, bih, bhh):
        g = x @ wih.T + bih + h @ whh.T + bhh
        i, f, gg, o = jnp.split(g, 4, axis=1)
        i = jax.nn.sigmoid(i)
        f = jax.nn.sigmoid(f)
        gg = jnp.tanh(gg)
        o = jax.nn.sigmoid(o)
        c = f * c + i * gg
        h = o * jnp.tanh(c)
        return h, c

    outs = []
    for t in range(P):
        combined = jnp.concatenate([h1, z], axis=1)
        attn = jax.nn.softmax(combined @ p['attn_w'].T + p['attn_b'], axis=1)
        context = (attn * z) @ p['ctx_w'].T + p['ctx_b']
        x = jnp.concatenate(
            [jnp.broadcast_to(p['emb'][t], (B, E)), context], axis=1)
        lstm_in = jax.nn.relu(x @ p['in_w'].T + p['in_b'])
        for _ in range(2):   # LSTM is stepped twice per timestep in the forward
            h0, c0 = cell(lstm_in, h0, c0,
                          p['wih0'], p['whh0'], p['bih0'], p['bhh0'])
            h1, c1 = cell(h0, h1, c1,
                          p['wih1'], p['whh1'], p['bih1'], p['bhh1'])
        outs.append(h1 @ p['out_w'].T + p['out_b'])      # [B, 1]
    return jnp.stack(outs, axis=1)                       # [B, P, 1]


if __name__ == "__main__":
    key = jax.random.PRNGKey(0)
    pkey, zkey = jax.random.split(key)
    params = init_params(pkey)
    z = jax.random.normal(zkey, (BATCH, LATENT_DIM), jnp.float32)

    out = latent_to_profile_decoder(z, params)
    out = jax.block_until_ready(out)
    assert out.shape == (BATCH, PROFILE_LEN, 1)

    ref = reference_forward(z, params)
    np.testing.assert_allclose(np.asarray(out), np.asarray(ref),
                               rtol=1e-4, atol=1e-4)
    print("KERNEL_OK")
</pallas_src>

<mosaic_0001>
module attributes {stable_mosaic.version = 11 : i64} {
  func.func @_decoder_kernel(%arg0: memref<8x64xf32, #tpu.memory_space<vmem>>, %arg1: memref<8x64xf32, #tpu.memory_space<vmem>>, %arg2: memref<128x64xf32, #tpu.memory_space<vmem>>, %arg3: memref<64x128xf32, #tpu.memory_space<vmem>>, %arg4: memref<1x128xf32, #tpu.memory_space<vmem>>, %arg5: memref<32x128xf32, #tpu.memory_space<vmem>>, %arg6: memref<128x128xf32, #tpu.memory_space<vmem>>, %arg7: memref<256x512xf32, #tpu.memory_space<vmem>>, %arg8: memref<1x512xf32, #tpu.memory_space<vmem>>, %arg9: memref<256x512xf32, #tpu.memory_space<vmem>>, %arg10: memref<1x512xf32, #tpu.memory_space<vmem>>, %arg11: memref<128x1xf32, #tpu.memory_space<vmem>>, %arg12: memref<1x1xf32, #tpu.memory_space<vmem>>, %arg13: memref<8x31xf32, #tpu.memory_space<vmem>>, %arg14: memref<8x128xf32, #tpu.memory_space<vmem>>, %arg15: memref<8x128xf32, #tpu.memory_space<vmem>>, %arg16: memref<8x128xf32, #tpu.memory_space<vmem>>, %arg17: memref<8x128xf32, #tpu.memory_space<vmem>>) attributes {dimension_semantics = [], scalar_prefetch = 0 : i64, scratch_operands = 4 : i64, tpu.core_type = #tpu.core_type<tc>} {
    %cst = arith.constant 0.000000e+00 : f32
    %0 = vector.broadcast %cst : f32 to vector<8x128xf32>
    %c0 = arith.constant 0 : index
    %c0_0 = arith.constant 0 : index
    %1 = vector.load %arg14[%c0, %c0_0] : memref<8x128xf32, #tpu.memory_space<vmem>>, vector<8x128xf32>
    tpu.vector_store %arg14[%c0, %c0_0], %0 {strides = array<i32>} : memref<8x128xf32, #tpu.memory_space<vmem>>, vector<8x128xf32>,
    %cst_1 = arith.constant 0.000000e+00 : f32
    %2 = vector.broadcast %cst_1 : f32 to vector<8x128xf32>
    %c0_2 = arith.constant 0 : index
    %c0_3 = arith.constant 0 : index
    %3 = vector.load %arg15[%c0_2, %c0_3] : memref<8x128xf32, #tpu.memory_space<vmem>>, vector<8x128xf32>
    tpu.vector_store %arg15[%c0_2, %c0_3], %2 {strides = array<i32>} : memref<8x128xf32, #tpu.memory_space<vmem>>, vector<8x128xf32>,
    %cst_4 = arith.constant 0.000000e+00 : f32
    %4 = vector.broadcast %cst_4 : f32 to vector<8x128xf32>
    %c0_5 = arith.constant 0 : index
    %c0_6 = arith.constant 0 : index
    %5 = vector.load %arg16[%c0_5, %c0_6] : memref<8x128xf32, #tpu.memory_space<vmem>>, vector<8x128xf32>
    tpu.vector_store %arg16[%c0_5, %c0_6], %4 {strides = array<i32>} : memref<8x128xf32, #tpu.memory_space<vmem>>, vector<8x128xf32>,
    %cst_7 = arith.constant 0.000000e+00 : f32
    %6 = vector.broadcast %cst_7 : f32 to vector<8x128xf32>
    %c0_8 = arith.constant 0 : index
    %c0_9 = arith.constant 0 : index
    %7 = vector.load %arg17[%c0_8, %c0_9] : memref<8x128xf32, #tpu.memory_space<vmem>>, vector<8x128xf32>
    tpu.vector_store %arg17[%c0_8, %c0_9], %6 {strides = array<i32>} : memref<8x128xf32, #tpu.memory_space<vmem>>, vector<8x128xf32>,
    %cst_10 = arith.constant 0.000000e+00 : f32
    %8 = vector.broadcast %cst_10 : f32 to vector<8x31xf32>
    %c0_11 = arith.constant 0 : index
    %c0_12 = arith.constant 0 : index
    %9 = vector.load %arg13[%c0_11, %c0_12] : memref<8x31xf32, #tpu.memory_space<vmem>>, vector<8x31xf32>
    tpu.vector_store %arg13[%c0_11, %c0_12], %8 {strides = array<i32>} : memref<8x31xf32, #tpu.memory_space<vmem>>, vector<8x31xf32>,
    %c0_13 = arith.constant 0 : index
    %c0_14 = arith.constant 0 : index
    %10 = vector.load %arg0[%c0_13, %c0_14] : memref<8x64xf32, #tpu.memory_space<vmem>>, vector<8x64xf32>
    %c0_15 = arith.constant 0 : index
    %c0_16 = arith.constant 0 : index
    %11 = vector.load %arg1[%c0_15, %c0_16] : memref<8x64xf32, #tpu.memory_space<vmem>>, vector<8x64xf32>
    %c0_17 = arith.constant 0 : index
    %c0_18 = arith.constant 0 : index
    %12 = vector.load %arg5[%c0_17, %c0_18] : memref<32x128xf32, #tpu.memory_space<vmem>>, vector<32x128xf32>
    %13 = tpu.iota {dimensions = array<i32: 0>} : vector<32x1xi32>
    %14 = tpu.iota {dimensions = array<i32: 1>} : vector<8x31xi32>
    %c0_i32 = arith.constant 0 : i32
    %c31_i32 = arith.constant 31 : i32
    %15 = arith.addi %c0_i32, %c31_i32 : i32
    %c1_i32 = arith.constant 1 : i32
    scf.for %arg18 = %c0_i32 to %15 step %c1_i32  : i32 {
      %c1_i32_20 = arith.constant 1 : i32
      %16 = arith.muli %arg18, %c1_i32_20 : i32
      %c0_i32_21 = arith.constant 0 : i32
      %17 = arith.addi %c0_i32_21, %16 : i32
      %c0_22 = arith.constant 0 : index
      %c0_23 = arith.constant 0 : index
      %18 = vector.load %arg16[%c0_22, %c0_23] : memref<8x128xf32, #tpu.memory_space<vmem>>, vector<8x128xf32>
      %c0_24 = arith.constant 0 : index
      %c0_25 = arith.constant 0 : index
      %19 = vector.load %arg2[%c0_24, %c0_25] : memref<128x64xf32, #tpu.memory_space<vmem>>, vector<128x64xf32>
      %cst_26 = arith.constant dense<0.000000e+00> : vector<8x64xf32>
      %20 = tpu.matmul %18, %19, %cst_26 {dimension_numbers = #tpu.dot_dimension_numbers<[1], [0], [0], [1], [0, 0, 1, 1], [], []>} : vector<8x128xf32>, vector<128x64xf32>, vector<8x64xf32> -> vector<8x64xf32>
      %21 = arith.addf %20, %11 : vector<8x64xf32>
      %cst_27 = arith.constant dense<0xFF800000> : vector<8xf32>
      %22 = vector.multi_reduction <maximumf>, %21, %cst_27 [1] : vector<8x64xf32> to vector<8xf32>
      %23 = vector.shape_cast %22 : vector<8xf32> to vector<8x1xf32>
      %24 = vector.broadcast %23 : vector<8x1xf32> to vector<8x64xf32>
      %25 = arith.subf %21, %24 : vector<8x64xf32>
      %26 = math.exp %25 : vector<8x64xf32>
      %cst_28 = arith.constant dense<0.000000e+00> : vector<8xf32>
      %27 = vector.multi_reduction <add>, %26, %cst_28 [1] : vector<8x64xf32> to vector<8xf32>
      %28 = vector.shape_cast %27 : vector<8xf32> to vector<8x1xf32>
      %cst_29 = arith.constant 1.000000e+00 : f32
      %29 = vector.broadcast %cst_29 : f32 to vector<8x1xf32>
      %30 = arith.divf %29, %28 : vector<8x1xf32>
      %31 = vector.broadcast %30 : vector<8x1xf32> to vector<8x64xf32>
      %32 = arith.mulf %26, %31 : vector<8x64xf32>
      %33 = arith.mulf %32, %10 : vector<8x64xf32>
      %c0_30 = arith.constant 0 : index
      %c0_31 = arith.constant 0 : index
      %34 = vector.load %arg3[%c0_30, %c0_31] : memref<64x128xf32, #tpu.memory_space<vmem>>, vector<64x128xf32>
      %cst_32 = arith.constant dense<0.000000e+00> : vector<8x128xf32>
      %35 = tpu.matmul %33, %34, %cst_32 {dimension_numbers = #tpu.dot_dimension_numbers<[1], [0], [0], [1], [0, 0, 1, 1], [], []>} : vector<8x64xf32>, vector<64x128xf32>, vector<8x128xf32> -> vector<8x128xf32>
      %c0_33 = arith.constant 0 : index
      %c0_34 = arith.constant 0 : index
      %36 = vector.load %arg4[%c0_33, %c0_34] : memref<1x128xf32, #tpu.memory_space<vmem>>, vector<1x128xf32>
      %37 = vector.broadcast %36 : vector<1x128xf32> to vector<8x128xf32>
      %38 = arith.addf %35, %37 : vector<8x128xf32>
      %39 = vector.broadcast %17 : i32 to vector<32x1xi32>
      %40 = arith.cmpi eq, %13, %39 : vector<32x1xi32>
      %cst_35 = arith.constant 0.000000e+00 : f32
      %41 = vector.shape_cast %40 : vector<32x1xi1> to vector<32x1xi1>
      %42 = vector.broadcast %41 : vector<32x1xi1> to vector<32x128xi1>
      %43 = vector.broadcast %cst_35 : f32 to vector<32x128xf32>
      %44 = arith.select %42, %12, %43 : vector<32x128xi1>, vector<32x128xf32>
      %cst_36 = arith.constant dense<0.000000e+00> : vector<128xf32>
      %45 = vector.multi_reduction <add>, %44, %cst_36 [0] : vector<32x128xf32> to vector<128xf32>
      %46 = vector.shape_cast %45 : vector<128xf32> to vector<1x128xf32>
      %c0_37 = arith.constant 0 : index
      %c0_38 = arith.constant 0 : index
      %47 = vector.load %arg6[%c0_37, %c0_38] : memref<128x128xf32, #tpu.memory_space<vmem>>, vector<128x128xf32>
      %cst_39 = arith.constant dense<0.000000e+00> : vector<8x128xf32>
      %48 = tpu.matmul %38, %47, %cst_39 {dimension_numbers = #tpu.dot_dimension_numbers<[1], [0], [0], [1], [0, 0, 1, 1], [], []>} : vector<8x128xf32>, vector<128x128xf32>, vector<8x128xf32> -> vector<8x128xf32>
      %49 = vector.broadcast %46 : vector<1x128xf32> to vector<8x128xf32>
      %50 = arith.addf %49, %48 : vector<8x128xf32>
      %cst_40 = arith.constant 0.000000e+00 : f32
      %51 = vector.broadcast %cst_40 : f32 to vector<8x128xf32>
      %52 = arith.maximumf %50, %51 : vector<8x128xf32>
      %c0_41 = arith.constant 0 : index
      %c0_42 = arith.constant 0 : index
      %53 = vector.load %arg14[%c0_41, %c0_42] : memref<8x128xf32, #tpu.memory_space<vmem>>, vector<8x128xf32>
      %54 = tpu.concatenate %52, %53 in 1 : vector<8x128xf32>, vector<8x128xf32> -> vector<8x256xf32>
      %c0_43 = arith.constant 0 : index
      %c0_44 = arith.constant 0 : index
      %55 = vector.load %arg15[%c0_43, %c0_44] : memref<8x128xf32, #tpu.memory_space<vmem>>, vector<8x128xf32>
      %c0_45 = arith.constant 0 : index
      %c0_46 = arith.constant 0 : index
      %56 = vector.load %arg7[%c0_45, %c0_46] : memref<256x512xf32, #tpu.memory_space<vmem>>, vector<256x512xf32>
      %cst_47 = arith.constant dense<0.000000e+00> : vector<8x512xf32>
      %57 = tpu.matmul %54, %56, %cst_47 {dimension_numbers = #tpu.dot_dimension_numbers<[1], [0], [0], [1], [0, 0, 1, 1], [], []>} : vector<8x256xf32>, vector<256x512xf32>, vector<8x512xf32> -> vector<8x512xf32>
      %c0_48 = arith.constant 0 : index
      %c0_49 = arith.constant 0 : index
      %58 = vector.load %arg8[%c0_48, %c0_49] : memref<1x512xf32, #tpu.memory_space<vmem>>, vector<1x512xf32>
      %59 = vector.broadcast %58 : vector<1x512xf32> to vector<8x512xf32>
      %60 = arith.addf %57, %59 : vector<8x512xf32>
      %61 = vector.extract_strided_slice %60 {offsets = [0, 0], sizes = [8, 128], strides = [1, 1]} : vector<8x512xf32> to vector<8x128xf32>
      %62 = arith.negf %61 : vector<8x128xf32>
      %63 = math.exp %62 : vector<8x128xf32>
      %cst_50 = arith.constant 1.000000e+00 : f32
      %64 = vector.broadcast %cst_50 : f32 to vector<8x128xf32>
      %65 = arith.addf %64, %63 : vector<8x128xf32>
      %66 = arith.divf %64, %65 : vector<8x128xf32>
      %67 = vector.extract_strided_slice %60 {offsets = [0, 128], sizes = [8, 128], strides = [1, 1]} : vector<8x512xf32> to vector<8x128xf32>
      %68 = arith.negf %67 : vector<8x128xf32>
      %69 = math.exp %68 : vector<8x128xf32>
      %cst_51 = arith.constant 1.000000e+00 : f32
      %70 = vector.broadcast %cst_51 : f32 to vector<8x128xf32>
      %71 = arith.addf %70, %69 : vector<8x128xf32>
      %72 = arith.divf %70, %71 : vector<8x128xf32>
      %73 = vector.extract_strided_slice %60 {offsets = [0, 256], sizes = [8, 128], strides = [1, 1]} : vector<8x512xf32> to vector<8x128xf32>
      %74 = math.tanh %73 : vector<8x128xf32>
      %75 = vector.extract_strided_slice %60 {offsets = [0, 384], sizes = [8, 128], strides = [1, 1]} : vector<8x512xf32> to vector<8x128xf32>
      %76 = arith.negf %75 : vector<8x128xf32>
      %77 = math.exp %76 : vector<8x128xf32>
      %cst_52 = arith.constant 1.000000e+00 : f32
      %78 = vector.broadcast %cst_52 : f32 to vector<8x128xf32>
      %79 = arith.addf %78, %77 : vector<8x128xf32>
      %80 = arith.divf %78, %79 : vector<8x128xf32>
      %81 = arith.mulf %72, %55 : vector<8x128xf32>
      %82 = arith.mulf %66, %74 : vector<8x128xf32>
      %83 = arith.addf %81, %82 : vector<8x128xf32>
      %84 = math.tanh %83 : vector<8x128xf32>
      %85 = arith.mulf %80, %84 : vector<8x128xf32>
      %c0_53 = arith.constant 0 : index
      %c0_54 = arith.constant 0 : index
      %86 = vector.load %arg16[%c0_53, %c0_54] : memref<8x128xf32, #tpu.memory_space<vmem>>, vector<8x128xf32>
      %87 = tpu.concatenate %85, %86 in 1 : vector<8x128xf32>, vector<8x128xf32> -> vector<8x256xf32>
      %c0_55 = arith.constant 0 : index
      %c0_56 = arith.constant 0 : index
      %88 = vector.load %arg17[%c0_55, %c0_56] : memref<8x128xf32, #tpu.memory_space<vmem>>, vector<8x128xf32>
      %c0_57 = arith.constant 0 : index
      %c0_58 = arith.constant 0 : index
      %89 = vector.load %arg9[%c0_57, %c0_58] : memref<256x512xf32, #tpu.memory_space<vmem>>, vector<256x512xf32>
      %cst_59 = arith.constant dense<0.000000e+00> : vector<8x512xf32>
      %90 = tpu.matmul %87, %89, %cst_59 {dimension_numbers = #tpu.dot_dimension_numbers<[1], [0], [0], [1], [0, 0, 1, 1], [], []>} : vector<8x256xf32>, vector<256x512xf32>, vector<8x512xf32> -> vector<8x512xf32>
      %c0_60 = arith.constant 0 : index
      %c0_61 = arith.constant 0 : index
      %91 = vector.load %arg10[%c0_60, %c0_61] : memref<1x512xf32, #tpu.memory_space<vmem>>, vector<1x512xf32>
      %92 = vector.broadcast %91 : vector<1x512xf32> to vector<8x512xf32>
      %93 = arith.addf %90, %92 : vector<8x512xf32>
      %94 = vector.extract_strided_slice %93 {offsets = [0, 0], sizes = [8, 128], strides = [1, 1]} : vector<8x512xf32> to vector<8x128xf32>
      %95 = arith.negf %94 : vector<8x128xf32>
      %96 = math.exp %95 : vector<8x128xf32>
      %cst_62 = arith.constant 1.000000e+00 : f32
      %97 = vector.broadcast %cst_62 : f32 to vector<8x128xf32>
      %98 = arith.addf %97, %96 : vector<8x128xf32>
      %99 = arith.divf %97, %98 : vector<8x128xf32>
      %100 = vector.extract_strided_slice %93 {offsets = [0, 128], sizes = [8, 128], strides = [1, 1]} : vector<8x512xf32> to vector<8x128xf32>
      %101 = arith.negf %100 : vector<8x128xf32>
      %102 = math.exp %101 : vector<8x128xf32>
      %cst_63 = arith.constant 1.000000e+00 : f32
      %103 = vector.broadcast %cst_63 : f32 to vector<8x128xf32>
      %104 = arith.addf %103, %102 : vector<8x128xf32>
      %105 = arith.divf %103, %104 : vector<8x128xf32>
      %106 = vector.extract_strided_slice %93 {offsets = [0, 256], sizes = [8, 128], strides = [1, 1]} : vector<8x512xf32> to vector<8x128xf32>
      %107 = math.tanh %106 : vector<8x128xf32>
      %108 = vector.extract_strided_slice %93 {offsets = [0, 384], sizes = [8, 128], strides = [1, 1]} : vector<8x512xf32> to vector<8x128xf32>
      %109 = arith.negf %108 : vector<8x128xf32>
      %110 = math.exp %109 : vector<8x128xf32>
      %cst_64 = arith.constant 1.000000e+00 : f32
      %111 = vector.broadcast %cst_64 : f32 to vector<8x128xf32>
      %112 = arith.addf %111, %110 : vector<8x128xf32>
      %113 = arith.divf %111, %112 : vector<8x128xf32>
      %114 = arith.mulf %105, %88 : vector<8x128xf32>
      %115 = arith.mulf %99, %107 : vector<8x128xf32>
      %116 = arith.addf %114, %115 : vector<8x128xf32>
      %117 = math.tanh %116 : vector<8x128xf32>
      %118 = arith.mulf %113, %117 : vector<8x128xf32>
      %c0_65 = arith.constant 0 : index
      %c0_66 = arith.constant 0 : index
      %119 = vector.load %arg14[%c0_65, %c0_66] : memref<8x128xf32, #tpu.memory_space<vmem>>, vector<8x128xf32>
      tpu.vector_store %arg14[%c0_65, %c0_66], %85 {strides = array<i32>} : memref<8x128xf32, #tpu.memory_space<vmem>>, vector<8x128xf32>,
      %c0_67 = arith.constant 0 : index
      %c0_68 = arith.constant 0 : index
      %120 = vector.load %arg15[%c0_67, %c0_68] : memref<8x128xf32, #tpu.memory_space<vmem>>, vector<8x128xf32>
      tpu.vector_store %arg15[%c0_67, %c0_68], %83 {strides = array<i32>} : memref<8x128xf32, #tpu.memory_space<vmem>>, vector<8x128xf32>,
      %c0_69 = arith.constant 0 : index
      %c0_70 = arith.constant 0 : index
      %121 = vector.load %arg16[%c0_69, %c0_70] : memref<8x128xf32, #tpu.memory_space<vmem>>, vector<8x128xf32>
      tpu.vector_store %arg16[%c0_69, %c0_70], %118 {strides = array<i32>} : memref<8x128xf32, #tpu.memory_space<vmem>>, vector<8x128xf32>,
      %c0_71 = arith.constant 0 : index
      %c0_72 = arith.constant 0 : index
      %122 = vector.load %arg17[%c0_71, %c0_72] : memref<8x128xf32, #tpu.memory_space<vmem>>, vector<8x128xf32>
      tpu.vector_store %arg17[%c0_71, %c0_72], %116 {strides = array<i32>} : memref<8x128xf32, #tpu.memory_space<vmem>>, vector<8x128xf32>,
      %c0_73 = arith.constant 0 : index
      %c0_74 = arith.constant 0 : index
      %123 = vector.load %arg14[%c0_73, %c0_74] : memref<8x128xf32, #tpu.memory_space<vmem>>, vector<8x128xf32>
      %124 = tpu.concatenate %52, %123 in 1 : vector<8x128xf32>, vector<8x128xf32> -> vector<8x256xf32>
      %c0_75 = arith.constant 0 : index
      %c0_76 = arith.constant 0 : index
      %125 = vector.load %arg15[%c0_75, %c0_76] : memref<8x128xf32, #tpu.memory_space<vmem>>, vector<8x128xf32>
      %c0_77 = arith.constant 0 : index
      %c0_78 = arith.constant 0 : index
      %126 = vector.load %arg7[%c0_77, %c0_78] : memref<256x512xf32, #tpu.memory_space<vmem>>, vector<256x512xf32>
      %cst_79 = arith.constant dense<0.000000e+00> : vector<8x512xf32>
      %127 = tpu.matmul %124, %126, %cst_79 {dimension_numbers = #tpu.dot_dimension_numbers<[1], [0], [0], [1], [0, 0, 1, 1], [], []>} : vector<8x256xf32>, vector<256x512xf32>, vector<8x512xf32> -> vector<8x512xf32>
      %c0_80 = arith.constant 0 : index
      %c0_81 = arith.constant 0 : index
      %128 = vector.load %arg8[%c0_80, %c0_81] : memref<1x512xf32, #tpu.memory_space<vmem>>, vector<1x512xf32>
      %129 = vector.broadcast %128 : vector<1x512xf32> to vector<8x512xf32>
      %130 = arith.addf %127, %129 : vector<8x512xf32>
      %131 = vector.extract_strided_slice %130 {offsets = [0, 0], sizes = [8, 128], strides = [1, 1]} : vector<8x512xf32> to vector<8x128xf32>
      %132 = arith.negf %131 : vector<8x128xf32>
      %133 = math.exp %132 : vector<8x128xf32>
      %cst_82 = arith.constant 1.000000e+00 : f32
      %134 = vector.broadcast %cst_82 : f32 to vector<8x128xf32>
      %135 = arith.addf %134, %133 : vector<8x128xf32>
      %136 = arith.divf %134, %135 : vector<8x128xf32>
      %137 = vector.extract_strided_slice %130 {offsets = [0, 128], sizes = [8, 128], strides = [1, 1]} : vector<8x512xf32> to vector<8x128xf32>
      %138 = arith.negf %137 : vector<8x128xf32>
      %139 = math.exp %138 : vector<8x128xf32>
      %cst_83 = arith.constant 1.000000e+00 : f32
      %140 = vector.broadcast %cst_83 : f32 to vector<8x128xf32>
      %141 = arith.addf %140, %139 : vector<8x128xf32>
      %142 = arith.divf %140, %141 : vector<8x128xf32>
      %143 = vector.extract_strided_slice %130 {offsets = [0, 256], sizes = [8, 128], strides = [1, 1]} : vector<8x512xf32> to vector<8x128xf32>
      %144 = math.tanh %143 : vector<8x128xf32>
      %145 = vector.extract_strided_slice %130 {offsets = [0, 384], sizes = [8, 128], strides = [1, 1]} : vector<8x512xf32> to vector<8x128xf32>
      %146 = arith.negf %145 : vector<8x128xf32>
      %147 = math.exp %146 : vector<8x128xf32>
      %cst_84 = arith.constant 1.000000e+00 : f32
      %148 = vector.broadcast %cst_84 : f32 to vector<8x128xf32>
      %149 = arith.addf %148, %147 : vector<8x128xf32>
      %150 = arith.divf %148, %149 : vector<8x128xf32>
      %151 = arith.mulf %142, %125 : vector<8x128xf32>
      %152 = arith.mulf %136, %144 : vector<8x128xf32>
      %153 = arith.addf %151, %152 : vector<8x128xf32>
      %154 = math.tanh %153 : vector<8x128xf32>
      %155 = arith.mulf %150, %154 : vector<8x128xf32>
      %c0_85 = arith.constant 0 : index
      %c0_86 = arith.constant 0 : index
      %156 = vector.load %arg16[%c0_85, %c0_86] : memref<8x128xf32, #tpu.memory_space<vmem>>, vector<8x128xf32>
      %157 = tpu.concatenate %155, %156 in 1 : vector<8x128xf32>, vector<8x128xf32> -> vector<8x256xf32>
      %c0_87 = arith.constant 0 : index
      %c0_88 = arith.constant 0 : index
      %158 = vector.load %arg17[%c0_87, %c0_88] : memref<8x128xf32, #tpu.memory_space<vmem>>, vector<8x128xf32>
      %c0_89 = arith.constant 0 : index
      %c0_90 = arith.constant 0 : index
      %159 = vector.load %arg9[%c0_89, %c0_90] : memref<256x512xf32, #tpu.memory_space<vmem>>, vector<256x512xf32>
      %cst_91 = arith.constant dense<0.000000e+00> : vector<8x512xf32>
      %160 = tpu.matmul %157, %159, %cst_91 {dimension_numbers = #tpu.dot_dimension_numbers<[1], [0], [0], [1], [0, 0, 1, 1], [], []>} : vector<8x256xf32>, vector<256x512xf32>, vector<8x512xf32> -> vector<8x512xf32>
      %c0_92 = arith.constant 0 : index
      %c0_93 = arith.constant 0 : index
      %161 = vector.load %arg10[%c0_92, %c0_93] : memref<1x512xf32, #tpu.memory_space<vmem>>, vector<1x512xf32>
      %162 = vector.broadcast %161 : vector<1x512xf32> to vector<8x512xf32>
      %163 = arith.addf %160, %162 : vector<8x512xf32>
      %164 = vector.extract_strided_slice %163 {offsets = [0, 0], sizes = [8, 128], strides = [1, 1]} : vector<8x512xf32> to vector<8x128xf32>
      %165 = arith.negf %164 : vector<8x128xf32>
      %166 = math.exp %165 : vector<8x128xf32>
      %cst_94 = arith.constant 1.000000e+00 : f32
      %167 = vector.broadcast %cst_94 : f32 to vector<8x128xf32>
      %168 = arith.addf %167, %166 : vector<8x128xf32>
      %169 = arith.divf %167, %168 : vector<8x128xf32>
      %170 = vector.extract_strided_slice %163 {offsets = [0, 128], sizes = [8, 128], strides = [1, 1]} : vector<8x512xf32> to vector<8x128xf32>
      %171 = arith.negf %170 : vector<8x128xf32>
      %172 = math.exp %171 : vector<8x128xf32>
      %cst_95 = arith.constant 1.000000e+00 : f32
      %173 = vector.broadcast %cst_95 : f32 to vector<8x128xf32>
      %174 = arith.addf %173, %172 : vector<8x128xf32>
      %175 = arith.divf %173, %174 : vector<8x128xf32>
      %176 = vector.extract_strided_slice %163 {offsets = [0, 256], sizes = [8, 128], strides = [1, 1]} : vector<8x512xf32> to vector<8x128xf32>
      %177 = math.tanh %176 : vector<8x128xf32>
      %178 = vector.extract_strided_slice %163 {offsets = [0, 384], sizes = [8, 128], strides = [1, 1]} : vector<8x512xf32> to vector<8x128xf32>
      %179 = arith.negf %178 : vector<8x128xf32>
      %180 = math.exp %179 : vector<8x128xf32>
      %cst_96 = arith.constant 1.000000e+00 : f32
      %181 = vector.broadcast %cst_96 : f32 to vector<8x128xf32>
      %182 = arith.addf %181, %180 : vector<8x128xf32>
      %183 = arith.divf %181, %182 : vector<8x128xf32>
      %184 = arith.mulf %175, %158 : vector<8x128xf32>
      %185 = arith.mulf %169, %177 : vector<8x128xf32>
      %186 = arith.addf %184, %185 : vector<8x128xf32>
      %187 = math.tanh %186 : vector<8x128xf32>
      %188 = arith.mulf %183, %187 : vector<8x128xf32>
      %c0_97 = arith.constant 0 : index
      %c0_98 = arith.constant 0 : index
      %189 = vector.load %arg14[%c0_97, %c0_98] : memref<8x128xf32, #tpu.memory_space<vmem>>, vector<8x128xf32>
      tpu.vector_store %arg14[%c0_97, %c0_98], %155 {strides = array<i32>} : memref<8x128xf32, #tpu.memory_space<vmem>>, vector<8x128xf32>,
      %c0_99 = arith.constant 0 : index
      %c0_100 = arith.constant 0 : index
      %190 = vector.load %arg15[%c0_99, %c0_100] : memref<8x128xf32, #tpu.memory_space<vmem>>, vector<8x128xf32>
      tpu.vector_store %arg15[%c0_99, %c0_100], %153 {strides = array<i32>} : memref<8x128xf32, #tpu.memory_space<vmem>>, vector<8x128xf32>,
      %c0_101 = arith.constant 0 : index
      %c0_102 = arith.constant 0 : index
      %191 = vector.load %arg16[%c0_101, %c0_102] : memref<8x128xf32, #tpu.memory_space<vmem>>, vector<8x128xf32>
      tpu.vector_store %arg16[%c0_101, %c0_102], %188 {strides = array<i32>} : memref<8x128xf32, #tpu.memory_space<vmem>>, vector<8x128xf32>,
      %c0_103 = arith.constant 0 : index
      %c0_104 = arith.constant 0 : index
      %192 = vector.load %arg17[%c0_103, %c0_104] : memref<8x128xf32, #tpu.memory_space<vmem>>, vector<8x128xf32>
      tpu.vector_store %arg17[%c0_103, %c0_104], %186 {strides = array<i32>} : memref<8x128xf32, #tpu.memory_space<vmem>>, vector<8x128xf32>,
      %c0_105 = arith.constant 0 : index
      %c0_106 = arith.constant 0 : index
      %193 = vector.load %arg11[%c0_105, %c0_106] : memref<128x1xf32, #tpu.memory_space<vmem>>, vector<128x1xf32>
      %cst_107 = arith.constant dense<0.000000e+00> : vector<8x1xf32>
      %194 = tpu.matmul %188, %193, %cst_107 {dimension_numbers = #tpu.dot_dimension_numbers<[1], [0], [0], [1], [0, 0, 1, 1], [], []>} : vector<8x128xf32>, vector<128x1xf32>, vector<8x1xf32> -> vector<8x1xf32>
      %c0_108 = arith.constant 0 : index
      %c0_109 = arith.constant 0 : index
      %195 = vector.load %arg12[%c0_108, %c0_109] : memref<1x1xf32, #tpu.memory_space<vmem>>, vector<1x1xf32>
      %196 = vector.broadcast %195 : vector<1x1xf32> to vector<8x1xf32>
      %197 = arith.addf %194, %196 : vector<8x1xf32>
      %198 = vector.broadcast %17 : i32 to vector<8x31xi32>
      %199 = arith.cmpi eq, %14, %198 : vector<8x31xi32>
      %c0_110 = arith.constant 0 : index
      %c0_111 = arith.constant 0 : index
      %200 = vector.load %arg13[%c0_110, %c0_111] : memref<8x31xf32, #tpu.memory_space<vmem>>, vector<8x31xf32>
      %201 = vector.shape_cast %197 : vector<8x1xf32> to vector<8x1xf32>
      %202 = vector.broadcast %201 : vector<8x1xf32> to vector<8x31xf32>
      %203 = arith.select %199, %202, %200 : vector<8x31xi1>, vector<8x31xf32>
      %c0_112 = arith.constant 0 : index
      %c0_113 = arith.constant 0 : index
      %204 = vector.load %arg13[%c0_112, %c0_113] : memref<8x31xf32, #tpu.memory_space<vmem>>, vector<8x31xf32>
      tpu.vector_store %arg13[%c0_112, %c0_113], %203 {strides = array<i32>} : memref<8x31xf32, #tpu.memory_space<vmem>>, vector<8x31xf32>,
    }
    %c31_i32_19 = arith.constant 31 : i32
    return
  }
}

</mosaic_0001>

<llo_original>
// kernel: latent_to_profile_decoder.1
$region0: #{latent_to_profile_decoder.1}
  #allocation0 [shape = 'u32[]', space=smem, size = 0x4, offset = 0x4, fixed_abs, tag = 'smem constant byte address 0x4 - core index']
  #allocation1 [shape = 'u32[144,128]{1,0:T(1,128)}', space=vmem, size = 0x12000, scoped, tag = 'internal scratch']
  #allocation2 [shape = 'f32[8,128]{1,0:T(8,128)}', space=vmem, size = 0x1000, scoped, tag = 'scratch operand']
  #allocation3 [shape = 'f32[8,128]{1,0:T(8,128)}', space=vmem, size = 0x1000, scoped, tag = 'scratch operand']
  #allocation4 [shape = 'f32[8,128]{1,0:T(8,128)}', space=vmem, size = 0x1000, scoped, tag = 'scratch operand']
  #allocation5 [shape = 'f32[8,128]{1,0:T(8,128)}', space=vmem, size = 0x1000, scoped, tag = 'scratch operand']
  #allocation6 [shape = 'f32[1,1]{1,0:T(1,128)S(1)}', space=vmem, size = 0x200, scoped, tag = 'scoped memory for latent_to_profile_decoder.1']
  %s0 = inlined_call_operand.vmem [shape: f32[8,64], index: 0, kind: input, shape index: {}]
  %s1 = inlined_call_operand.vmem [shape: f32[8,64], index: 1, kind: input, shape index: {}]
  %s2 = inlined_call_operand.vmem [shape: f32[128,64], index: 2, kind: input, shape index: {}]
  %s3 = inlined_call_operand.vmem [shape: f32[64,128], index: 3, kind: input, shape index: {}]
  %s4 = inlined_call_operand.vmem [shape: f32[1,128], index: 4, kind: input, shape index: {}]
  %s5 = inlined_call_operand.vmem [shape: f32[32,128], index: 5, kind: input, shape index: {}]
  %s6 = inlined_call_operand.vmem [shape: f32[128,128], index: 6, kind: input, shape index: {}]
  %s7 = inlined_call_operand.vmem [shape: f32[256,512], index: 7, kind: input, shape index: {}]
  %s8 = inlined_call_operand.vmem [shape: f32[1,512], index: 8, kind: input, shape index: {}]
  %s9 = inlined_call_operand.vmem [shape: f32[256,512], index: 9, kind: input, shape index: {}]
  %s10 = inlined_call_operand.vmem [shape: f32[1,512], index: 10, kind: input, shape index: {}]
  %s11 = inlined_call_operand.vmem [shape: f32[128,1], index: 11, kind: input, shape index: {}]
  %s12 = inlined_call_operand.<no memory space> [shape: f32[1,1], index: 12, kind: input, shape index: {}]
  %s13 = inlined_call_operand.hbm [shape: f32[8,31], index: 13, kind: output, shape index: {}]
  %s14 = sld [smem:[#allocation0]]
  $region69: #{latent_to_profile_decoder.1} parent=0
    _
  %s16 = ssub.s32 1, %s14
  %s17 = scalar_select 0, %s16, %s14
  %v18 = vstv %s12
  %19 = vst [vmem:[#allocation6] sm:$0x1] %v18
  $region1: #{latent_to_profile_decoder.1} parent=0
    #allocation7 [shape = 'u8[4096]{0}', space=vmem, size = 0x1000, scoped, tag = 'output window, operand 0, single buffered']
    #allocation8 [shape = 's32[1]{0}', space=sflag, size = 0x4, scoped, tag = 'scoped memory for latent_to_profile_decoder.1']
    %20 = vsyncpa [#allocation8], 0
    // Predicated region
    $region2: #{latent_to_profile_decoder.1} parent=1 // pred_check
      _
    $region3: #{latent_to_profile_decoder.1} parent=1 // pred_check_branch
      %22 = sbr.rel (0) target = $region5
    $region4: #{latent_to_profile_decoder.1} parent=1 // pred_region
      _
    $region5: #{latent_to_profile_decoder.1} parent=1 // pred_fallthru
      _
    // Predicated region
    $region6: #{latent_to_profile_decoder.1} parent=1 // pred_check
      _
    $region7: #{latent_to_profile_decoder.1} parent=1 // pred_check_branch
      %24 = sbr.rel (0) target = $region9
    $region8: #{latent_to_profile_decoder.1} parent=1 // pred_region
      _
    $region9: #{latent_to_profile_decoder.1} parent=1 // pred_fallthru
      _
    // Predicated region
    $region10: #{latent_to_profile_decoder.1} parent=1 // pred_check
      _
    $region11: #{latent_to_profile_decoder.1} parent=1 // pred_check_branch
      %26 = sbr.rel (0) target = $region13
    $region12: #{latent_to_profile_decoder.1} parent=1 // pred_region
      _
    $region13: #{latent_to_profile_decoder.1} parent=1 // pred_fallthru
      _
    // Predicated region
    $region14: #{latent_to_profile_decoder.1} parent=1 // pred_check
      _
    $region15: #{latent_to_profile_decoder.1} parent=1 // pred_check_branch
      %28 = sbr.rel (0) target = $region17
    $region16: #{latent_to_profile_decoder.1} parent=1 // pred_region
      _
    $region17: #{latent_to_profile_decoder.1} parent=1 // pred_fallthru
      _
    // Predicated region
    $region18: #{latent_to_profile_decoder.1} parent=1 // pred_check
      _
    $region19: #{latent_to_profile_decoder.1} parent=1 // pred_check_branch
      %30 = sbr.rel (0) target = $region21
    $region20: #{latent_to_profile_decoder.1} parent=1 // pred_region
      _
    $region21: #{latent_to_profile_decoder.1} parent=1 // pred_fallthru
      _
    // Predicated region
    $region22: #{latent_to_profile_decoder.1} parent=1 // pred_check
      _
    $region23: #{latent_to_profile_decoder.1} parent=1 // pred_check_branch
      %32 = sbr.rel (0) target = $region25
    $region24: #{latent_to_profile_decoder.1} parent=1 // pred_region
      _
    $region25: #{latent_to_profile_decoder.1} parent=1 // pred_fallthru
      _
    // Predicated region
    $region26: #{latent_to_profile_decoder.1} parent=1 // pred_check
      _
    $region27: #{latent_to_profile_decoder.1} parent=1 // pred_check_branch
      %34 = sbr.rel (0) target = $region29
    $region28: #{latent_to_profile_decoder.1} parent=1 // pred_region
      _
    $region29: #{latent_to_profile_decoder.1} parent=1 // pred_fallthru
      _
    // Predicated region
    $region30: #{latent_to_profile_decoder.1} parent=1 // pred_check
      _
    $region31: #{latent_to_profile_decoder.1} parent=1 // pred_check_branch
      %36 = sbr.rel (0) target = $region33
    $region32: #{latent_to_profile_decoder.1} parent=1 // pred_region
      _
    $region33: #{latent_to_profile_decoder.1} parent=1 // pred_fallthru
      _
    // Predicated region
    $region34: #{latent_to_profile_decoder.1} parent=1 // pred_check
      _
    $region35: #{latent_to_profile_decoder.1} parent=1 // pred_check_branch
      %38 = sbr.rel (0) target = $region37
    $region36: #{latent_to_profile_decoder.1} parent=1 // pred_region
      _
    $region37: #{latent_to_profile_decoder.1} parent=1 // pred_fallthru
      _
    // Predicated region
    $region38: #{latent_to_profile_decoder.1} parent=1 // pred_check
      _
    $region39: #{latent_to_profile_decoder.1} parent=1 // pred_check_branch
      %40 = sbr.rel (0) target = $region41
    $region40: #{latent_to_profile_decoder.1} parent=1 // pred_region
      _
    $region41: #{latent_to_profile_decoder.1} parent=1 // pred_fallthru
      _
    // Predicated region
    $region42: #{latent_to_profile_decoder.1} parent=1 // pred_check
      _
    $region43: #{latent_to_profile_decoder.1} parent=1 // pred_check_branch
      %42 = sbr.rel (0) target = $region45
    $region44: #{latent_to_profile_decoder.1} parent=1 // pred_region
      _
    $region45: #{latent_to_profile_decoder.1} parent=1 // pred_fallthru
      _
    // Predicated region
    $region46: #{latent_to_profile_decoder.1} parent=1 // pred_check
      _
    $region47: #{latent_to_profile_decoder.1} parent=1 // pred_check_branch
      %44 = sbr.rel (0) target = $region49
    $region48: #{latent_to_profile_decoder.1} parent=1 // pred_region
      _
    $region49: #{latent_to_profile_decoder.1} parent=1 // pred_fallthru
      _
    // Predicated region
    $region50: #{latent_to_profile_decoder.1} parent=1 // pred_check
      _
    $region51: #{latent_to_profile_decoder.1} parent=1 // pred_check_branch
      %46 = sbr.rel (0) target = $region53
    $region52: #{latent_to_profile_decoder.1} parent=1 // pred_region
      _
    $region53: #{latent_to_profile_decoder.1} parent=1 // pred_fallthru
      _
    %47 = vst [vmem:[#allocation2] sm:$0xff] 0.0
    %48 = vst [vmem:[#allocation3] sm:$0xff] 0.0
    %49 = vst [vmem:[#allocation4] sm:$0xff] 0.0
    %50 = vst [vmem:[#allocation5] sm:$0xff] 0.0
    %vm51 = vcmask 252928
    %52 = vst.msk [vmem:[#allocation7] sm:$0xff] %vm51, 0.0
    %v53 = vld [vmem:[%s0] sm:$0xff]
    %v54 = vld [vmem:[%s1] sm:$0xff]
    %v55 = vld [vmem:[%s5] sm:$0xff]
    %v56 = vld [vmem:[%s5 + $0x8] sm:$0xff]
    %v57 = vld [vmem:[%s5 + $0x10] sm:$0xff]
    %v58 = vld [vmem:[%s5 + $0x18] sm:$0xff]
    %v59 = vlaneseq
    %v60 = vshrl.u32 %v59, 7
    %v61 = vadd.s32 %v60, 8
    %v62 = vadd.s32 %v60, 16
    %v63 = vadd.s32 %v60, 24
    %v64 = vlaneseq
    %v65 = vand.u32 %v64, 127
    loop: start=0, step=1, limit=31
    $region54: #{latent_to_profile_decoder.1} parent=1 // loop_pre_header
      _
    $region55: #{latent_to_profile_decoder.1} parent=1 // loop_header
      %s67 = sphi 0, %s71
      %p68 = scmp.ge.s32.totalorder %s67, 31
    $region56: #{latent_to_profile_decoder.1} parent=1 // loop_header_branch
      %70 = sbr.rel (%p68) target = $region60
    $region57: #{latent_to_profile_decoder.1} parent=1 // loop_body
      %v72 = vld [vmem:[#allocation4] sm:$0xff]
      %v73 = vld [vmem:[%s2] sm:$0xff]
      %v74 = vld [vmem:[%s2 + $0x8] sm:$0xff]
      %v75 = vld [vmem:[%s2 + $0x10] sm:$0xff]
      %v76 = vld [vmem:[%s2 + $0x18] sm:$0xff]
      %v77 = vld [vmem:[%s2 + $0x20] sm:$0xff]
      %v78 = vld [vmem:[%s2 + $0x28] sm:$0xff]
      %v79 = vld [vmem:[%s2 + $0x30] sm:$0xff]
      %v80 = vld [vmem:[%s2 + $0x38] sm:$0xff]
      %v81 = vld [vmem:[%s2 + $0x40] sm:$0xff]
      %v82 = vld [vmem:[%s2 + $0x48] sm:$0xff]
      %v83 = vld [vmem:[%s2 + $0x50] sm:$0xff]
      %v84 = vld [vmem:[%s2 + $0x58] sm:$0xff]
      %v85 = vld [vmem:[%s2 + $0x60] sm:$0xff]
      %v86 = vld [vmem:[%s2 + $0x68] sm:$0xff]
      %v87 = vld [vmem:[%s2 + $0x70] sm:$0xff]
      %v88 = vld [vmem:[%s2 + $0x78] sm:$0xff]
      %89 = vmatprep.subr.mxu0 0.0
      %90 = vmatpush1.msra.mxu0 %v73
      %91 = vmatprep.subr.mxu0 0.0
      %92 = vmatpush1.msra.mxu0 %v74
      %93 = vmatprep.subr.mxu0 0.0
      %94 = vmatpush1.msra.mxu0 %v75
      %95 = vmatprep.subr.mxu0 0.0
      %96 = vmatpush1.msra.mxu0 %v76
      %97 = vmatprep.subr.mxu0 0.0
      %98 = vmatpush1.msra.mxu0 %v77
      %99 = vmatprep.subr.mxu0 0.0
      %100 = vmatpush1.msra.mxu0 %v78
      %101 = vmatprep.subr.mxu0 0.0
      %102 = vmatpush1.msra.mxu0 %v79
      %103 = vmatprep.subr.mxu0 0.0
      %104 = vmatpush1.msra.mxu0 %v80
      %105 = vmatprep.subr.mxu0 0.0
      %106 = vmatpush1.msra.mxu0 %v81
      %107 = vmatprep.subr.mxu0 0.0
      %108 = vmatpush1.msra.mxu0 %v82
      %109 = vmatprep.subr.mxu0 0.0
      %110 = vmatpush1.msra.mxu0 %v83
      %111 = vmatprep.subr.mxu0 0.0
      %112 = vmatpush1.msra.mxu0 %v84
      %113 = vmatprep.subr.mxu0 0.0
      %114 = vmatpush1.msra.mxu0 %v85
      %115 = vmatprep.subr.mxu0 0.0
      %116 = vmatpush1.msra.mxu0 %v86
      %117 = vmatprep.subr.mxu0 0.0
      %118 = vmatpush1.msra.mxu0 %v87
      %119 = vmatprep.subr.mxu0 0.0
      %120 = vmatpush1.msra.mxu0 %v88
      %121 = vmatprep.subr.mxu0 0.0
      %122 = vmatpush1.msra.mxu0 0.0
      %123 = vmatprep.subr.mxu0 0.0
      %124 = vmatpush1.msra.mxu0 0.0
      %125 = vmatprep.subr.mxu0 0.0
      %126 = vmatpush1.msra.mxu0 0.0
      %127 = vmatprep.subr.mxu0 0.0
      %128 = vmatpush1.msra.mxu0 0.0
      %129 = vmatprep.subr.mxu0 0.0
      %130 = vmatpush1.msra.mxu0 0.0
      %131 = vmatprep.subr.mxu0 0.0
      %132 = vmatpush1.msra.mxu0 0.0
      %133 = vmatprep.subr.mxu0 0.0
      %134 = vmatpush1.msra.mxu0 0.0
      %135 = vmatprep.subr.mxu0 0.0
      %136 = vmatpush1.msra.mxu0 0.0
      %137 = vmatprep.subr.mxu0 0.0
      %138 = vmatpush1.msra.mxu0 0.0
      %139 = vmatprep.subr.mxu0 0.0
      %140 = vmatpush1.msra.mxu0 0.0
      %141 = vmatprep.subr.mxu0 0.0
      %142 = vmatpush1.msra.mxu0 0.0
      %143 = vmatprep.subr.mxu0 0.0
      %144 = vmatpush1.msra.mxu0 0.0
      %145 = vmatprep.subr.mxu0 0.0
      %146 = vmatpush1.msra.mxu0 0.0
      %147 = vmatprep.subr.mxu0 0.0
      %148 = vmatpush1.msra.mxu0 0.0
      %149 = vmatprep.subr.mxu0 0.0
      %150 = vmatpush1.msra.mxu0 0.0
      %151 = vmatprep.subr.mxu0 0.0
      %152 = vmatpush1.msra.mxu0 0.0
      %153 = vmatprep.mubr.f32.mxu0 0.0
      %154 = vmatmul.mubr.f32.gmra.mrb[0].mxu0 %v72
      %v155 = vpop.f32.mrb[0].mxu0
      %v156 = vadd.f32 %v54, %v155
      %v157 = vpop.f32.mrb[0].mxu0
      %158 = vdwg.mxu0
      %vm159 = vcmask 523264
      %v160 = vsel %vm159, %v156, -inf
      %161 = vmax.xlane.f32.xlu0 %v160
      %v162 = vpop.xlane.xlu0 %161
      %v163 = vsub.f32 %v156, %v162
      %v164 = vmul.f32 %v163, 1.442695
      %v165 = vpow.pop %v164
      %v166 = vsel %vm159, %v165, 0.0
      %167 = vadd.xlane.f32.xlu0 %v166
      %v168 = vpop.xlane.xlu0 %167
      %v169 = vrcp.pop %v168
      %v170 = vmul.f32 1.0, %v169
      %v171 = vmul.f32 %v165, %v170
      %v172 = vmul.f32 %v171, %v53
      %v173 = vld [vmem:[%s3] sm:$0xff]
      %v174 = vld [vmem:[%s3 + $0x8] sm:$0xff]
      %v175 = vld [vmem:[%s3 + $0x10] sm:$0xff]
      %v176 = vld [vmem:[%s3 + $0x18] sm:$0xff]
      %v177 = vld [vmem:[%s3 + $0x20] sm:$0xff]
      %v178 = vld [vmem:[%s3 + $0x28] sm:$0xff]
      %v179 = vld [vmem:[%s3 + $0x30] sm:$0xff]
      %v180 = vld [vmem:[%s3 + $0x38] sm:$0xff]
      %v181 = vld [vmem:[%s4] sm:$0x1]
      %v183 = vlaneseq
      %v184 = vshrl.u32 %v183, 7
      %v185 = vsub.s32 0, %v184
      %v186 = vrot.slane %v181, %v185
      %v189 = vsel %vm159, %v172, 0
      %191 = vmatprep.subr.mxu0 0.0
      %192 = vmatpush1.msra.mxu0 %v173
      %193 = vmatprep.subr.mxu0 0.0
      %194 = vmatpush1.msra.mxu0 %v174
      %195 = vmatprep.subr.mxu0 0.0
      %196 = vmatpush1.msra.mxu0 %v175
      %197 = vmatprep.subr.mxu0 0.0
      %198 = vmatpush1.msra.mxu0 %v176
      %199 = vmatprep.subr.mxu0 0.0
      %200 = vmatpush1.msra.mxu0 %v177
      %201 = vmatprep.subr.mxu0 0.0
      %202 = vmatpush1.msra.mxu0 %v178
      %203 = vmatprep.subr.mxu0 0.0
      %204 = vmatpush1.msra.mxu0 %v179
      %205 = vmatprep.subr.mxu0 0.0
      %206 = vmatpush1.msra.mxu0 %v180
      %207 = vmatprep.subr.mxu0 0.0
      %208 = vmatpush1.msra.mxu0 0.0
      %209 = vmatprep.subr.mxu0 0.0
      %210 = vmatpush1.msra.mxu0 0.0
      %211 = vmatprep.subr.mxu0 0.0
      %212 = vmatpush1.msra.mxu0 0.0
      %213 = vmatprep.subr.mxu0 0.0
      %214 = vmatpush1.msra.mxu0 0.0
      %215 = vmatprep.subr.mxu0 0.0
      %216 = vmatpush1.msra.mxu0 0.0
      %217 = vmatprep.subr.mxu0 0.0
      %218 = vmatpush1.msra.mxu0 0.0
      %219 = vmatprep.subr.mxu0 0.0
      %220 = vmatpush1.msra.mxu0 0.0
      %221 = vmatprep.subr.mxu0 0.0
      %222 = vmatpush1.msra.mxu0 0.0
      %223 = vmatprep.subr.mxu0 0.0
      %224 = vmatpush1.msra.mxu0 0.0
      %225 = vmatprep.subr.mxu0 0.0
      %226 = vmatpush1.msra.mxu0 0.0
      %227 = vmatprep.subr.mxu0 0.0
      %228 = vmatpush1.msra.mxu0 0.0
      %229 = vmatprep.subr.mxu0 0.0
      %230 = vmatpush1.msra.mxu0 0.0
      %231 = vmatprep.subr.mxu0 0.0
      %232 = vmatpush1.msra.mxu0 0.0
      %233 = vmatprep.subr.mxu0 0.0
      %234 = vmatpush1.msra.mxu0 0.0
      %235 = vmatprep.subr.mxu0 0.0
      %236 = vmatpush1.msra.mxu0 0.0
      %237 = vmatprep.subr.mxu0 0.0
      %238 = vmatpush1.msra.mxu0 0.0
      %239 = vmatprep.subr.mxu0 0.0
      %240 = vmatpush1.msra.mxu0 0.0
      %241 = vmatprep.subr.mxu0 0.0
      %242 = vmatpush1.msra.mxu0 0.0
      %243 = vmatprep.subr.mxu0 0.0
      %244 = vmatpush1.msra.mxu0 0.0
      %245 = vmatprep.subr.mxu0 0.0
      %246 = vmatpush1.msra.mxu0 0.0
      %247 = vmatprep.subr.mxu0 0.0
      %248 = vmatpush1.msra.mxu0 0.0
      %249 = vmatprep.subr.mxu0 0.0
      %250 = vmatpush1.msra.mxu0 0.0
      %251 = vmatprep.subr.mxu0 0.0
      %252 = vmatpush1.msra.mxu0 0.0
      %253 = vmatprep.subr.mxu0 0.0
      %254 = vmatpush1.msra.mxu0 0.0
      %255 = vmatprep.mubr.f32.mxu0 0.0
      %256 = vmatmul.mubr.f32.gmra.mrb[0].mxu0 %v189
      %v257 = vpop.f32.mrb[0].mxu0
      %v258 = vadd.f32 %v186, %v257
      %v259 = vpop.f32.mrb[0].mxu0
      %260 = vdwg.mxu0
      %v261 = vstv %s67
      %vm262 = vcmp.eq.s32.totalorder %v60, %v261
      %vm263 = vcmp.eq.s32.totalorder %v61, %v261
      %vm264 = vcmp.eq.s32.totalorder %v62, %v261
      %vm265 = vcmp.eq.s32.totalorder %v63, %v261
      %v266 = vsel %vm262, 1, 0
      %v267 = vsel %vm263, 1, 0
      %v268 = vsel %vm264, 1, 0
      %v269 = vsel %vm265, 1, 0
      %vm270 = vcmp.eq.s32.totalorder %v266, 1
      %vm271 = vcmp.eq.s32.totalorder %v267, 1
      %vm272 = vcmp.eq.s32.totalorder %v268, 1
      %vm273 = vcmp.eq.s32.totalorder %v269, 1
      %v274 = vsel %vm270, %v55, 0.0
      %v275 = vsel %vm271, %v56, 0.0
      %v276 = vsel %vm272, %v57, 0.0
      %v277 = vsel %vm273, %v58, 0.0
      %v278 = vadd.f32 %v274, %v275
      %v279 = vadd.f32 %v278, %v276
      %v280 = vadd.f32 %v279, %v277
      %v281 = vrot.slane %v280, 4
      %v282 = vadd.f32 %v280, %v281
      %v283 = vrot.slane %v282, 2
      %v284 = vadd.f32 %v282, %v283
      %v285 = vrot.slane %v284, 1
      %v286 = vadd.f32 %v284, %v285
      %v287 = vld [vmem:[%s6] sm:$0xff]
      %v288 = vld [vmem:[%s6 + $0x8] sm:$0xff]
      %v289 = vld [vmem:[%s6 + $0x10] sm:$0xff]
      %v290 = vld [vmem:[%s6 + $0x18] sm:$0xff]
      %v291 = vld [vmem:[%s6 + $0x20] sm:$0xff]
      %v292 = vld [vmem:[%s6 + $0x28] sm:$0xff]
      %v293 = vld [vmem:[%s6 + $0x30] sm:$0xff]
      %v294 = vld [vmem:[%s6 + $0x38] sm:$0xff]
      %v295 = vld [vmem:[%s6 + $0x40] sm:$0xff]
      %v296 = vld [vmem:[%s6 + $0x48] sm:$0xff]
      %v297 = vld [vmem:[%s6 + $0x50] sm:$0xff]
      %v298 = vld [vmem:[%s6 + $0x58] sm:$0xff]
      %v299 = vld [vmem:[%s6 + $0x60] sm:$0xff]
      %v300 = vld [vmem:[%s6 + $0x68] sm:$0xff]
      %v301 = vld [vmem:[%s6 + $0x70] sm:$0xff]
      %v302 = vld [vmem:[%s6 + $0x78] sm:$0xff]
      %303 = vmatprep.subr.mxu0 0.0
      %304 = vmatpush1.msra.mxu0 %v287
      %305 = vmatprep.subr.mxu0 0.0
      %306 = vmatpush1.msra.mxu0 %v288
      %307 = vmatprep.subr.mxu0 0.0
      %308 = vmatpush1.msra.mxu0 %v289
      %309 = vmatprep.subr.mxu0 0.0
      %310 = vmatpush1.msra.mxu0 %v290
      %311 = vmatprep.subr.mxu0 0.0
      %312 = vmatpush1.msra.mxu0 %v291
      %313 = vmatprep.subr.mxu0 0.0
      %314 = vmatpush1.msra.mxu0 %v292
      %315 = vmatprep.subr.mxu0 0.0
      %316 = vmatpush1.msra.mxu0 %v293
      %317 = vmatprep.subr.mxu0 0.0
      %318 = vmatpush1.msra.mxu0 %v294
      %319 = vmatprep.subr.mxu0 0.0
      %320 = vmatpush1.msra.mxu0 %v295
      %321 = vmatprep.subr.mxu0 0.0
      %322 = vmatpush1.msra.mxu0 %v296
      %323 = vmatprep.subr.mxu0 0.0
      %324 = vmatpush1.msra.mxu0 %v297
      %325 = vmatprep.subr.mxu0 0.0
      %326 = vmatpush1.msra.mxu0 %v298
      %327 = vmatprep.subr.mxu0 0.0
      %328 = vmatpush1.msra.mxu0 %v299
      %329 = vmatprep.subr.mxu0 0.0
      %330 = vmatpush1.msra.mxu0 %v300
      %331 = vmatprep.subr.mxu0 0.0
      %332 = vmatpush1.msra.mxu0 %v301
      %333 = vmatprep.subr.mxu0 0.0
      %334 = vmatpush1.msra.mxu0 %v302
      %335 = vmatprep.subr.mxu0 0.0
      %336 = vmatpush1.msra.mxu0 0.0
      %337 = vmatprep.subr.mxu0 0.0
      %338 = vmatpush1.msra.mxu0 0.0
      %339 = vmatprep.subr.mxu0 0.0
      %340 = vmatpush1.msra.mxu0 0.0
      %341 = vmatprep.subr.mxu0 0.0
      %342 = vmatpush1.msra.mxu0 0.0
      %343 = vmatprep.subr.mxu0 0.0
      %344 = vmatpush1.msra.mxu0 0.0
      %345 = vmatprep.subr.mxu0 0.0
      %346 = vmatpush1.msra.mxu0 0.0
      %347 = vmatprep.subr.mxu0 0.0
      %348 = vmatpush1.msra.mxu0 0.0
      %349 = vmatprep.subr.mxu0 0.0
      %350 = vmatpush1.msra.mxu0 0.0
      %351 = vmatprep.subr.mxu0 0.0
      %352 = vmatpush1.msra.mxu0 0.0
      %353 = vmatprep.subr.mxu0 0.0
      %354 = vmatpush1.msra.mxu0 0.0
      %355 = vmatprep.subr.mxu0 0.0
      %356 = vmatpush1.msra.mxu0 0.0
      %357 = vmatprep.subr.mxu0 0.0
      %358 = vmatpush1.msra.mxu0 0.0
      %359 = vmatprep.subr.mxu0 0.0
      %360 = vmatpush1.msra.mxu0 0.0
      %361 = vmatprep.subr.mxu0 0.0
      %362 = vmatpush1.msra.mxu0 0.0
      %363 = vmatprep.subr.mxu0 0.0
      %364 = vmatpush1.msra.mxu0 0.0
      %365 = vmatprep.subr.mxu0 0.0
      %366 = vmatpush1.msra.mxu0 0.0
      %367 = vmatprep.mubr.f32.mxu0 0.0
      %368 = vmatmul.mubr.f32.gmra.mrb[0].mxu0 %v258
      %v369 = vpop.f32.mrb[0].mxu0
      %v370 = vadd.f32 0.0, %v369
      %v371 = vpop.f32.mrb[0].mxu0
      %372 = vdwg.mxu0
      %v373 = vadd.f32 %v286, %v370
      %v374 = vmax.f32 %v373, 0.0
      %v375 = vld [vmem:[#allocation2] sm:$0xff]
      %v376 = vld [vmem:[#allocation3] sm:$0xff]
      %v377 = vld [vmem:[%s7] sm:$0xff]
      %v378 = vld [vmem:[%s7 + $0x8] sm:$0xff]
      %v379 = vld [vmem:[%s7 + $0x10] sm:$0xff]
      %v380 = vld [vmem:[%s7 + $0x18] sm:$0xff]
      %v381 = vld [vmem:[%s7 + $0x20] sm:$0xff]
      %v382 = vld [vmem:[%s7 + $0x28] sm:$0xff]
      %v383 = vld [vmem:[%s7 + $0x30] sm:$0xff]
      %v384 = vld [vmem:[%s7 + $0x38] sm:$0xff]
      %v385 = vld [vmem:[%s7 + $0x40] sm:$0xff]
      %v386 = vld [vmem:[%s7 + $0x48] sm:$0xff]
      %v387 = vld [vmem:[%s7 + $0x50] sm:$0xff]
      %v388 = vld [vmem:[%s7 + $0x58] sm:$0xff]
      %v389 = vld [vmem:[%s7 + $0x60] sm:$0xff]
      %v390 = vld [vmem:[%s7 + $0x68] sm:$0xff]
      %v391 = vld [vmem:[%s7 + $0x70] sm:$0xff]
      %v392 = vld [vmem:[%s7 + $0x78] sm:$0xff]
      %v393 = vld [vmem:[%s7 + $0x80] sm:$0xff]
      %v394 = vld [vmem:[%s7 + $0x88] sm:$0xff]
      %v395 = vld [vmem:[%s7 + $0x90] sm:$0xff]
      %v396 = vld [vmem:[%s7 + $0x98] sm:$0xff]
      %v397 = vld [vmem:[%s7 + $0xa0] sm:$0xff]
      %v398 = vld [vmem:[%s7 + $0xa8] sm:$0xff]
      %v399 = vld [vmem:[%s7 + $0xb0] sm:$0xff]
      %v400 = vld [vmem:[%s7 + $0xb8] sm:$0xff]
      %v401 = vld [vmem:[%s7 + $0xc0] sm:$0xff]
      %v402 = vld [vmem:[%s7 + $0xc8] sm:$0xff]
      %v403 = vld [vmem:[%s7 + $0xd0] sm:$0xff]
      %v404 = vld [vmem:[%s7 + $0xd8] sm:$0xff]
      %v405 = vld [vmem:[%s7 + $0xe0] sm:$0xff]
      %v406 = vld [vmem:[%s7 + $0xe8] sm:$0xff]
      %v407 = vld [vmem:[%s7 + $0xf0] sm:$0xff]
      %v408 = vld [vmem:[%s7 + $0xf8] sm:$0xff]
      %v409 = vld [vmem:[%s7 + $0x100] sm:$0xff]
      %v410 = vld [vmem:[%s7 + $0x108] sm:$0xff]
      %v411 = vld [vmem:[%s7 + $0x110] sm:$0xff]
      %v412 = vld [vmem:[%s7 + $0x118] sm:$0xff]
      %v413 = vld [vmem:[%s7 + $0x120] sm:$0xff]
      %v414 = vld [vmem:[%s7 + $0x128] sm:$0xff]
      %v415 = vld [vmem:[%s7 + $0x130] sm:$0xff]
      %v416 = vld [vmem:[%s7 + $0x138] sm:$0xff]
      %v417 = vld [vmem:[%s7 + $0x140] sm:$0xff]
      %v418 = vld [vmem:[%s7 + $0x148] sm:$0xff]
      %v419 = vld [vmem:[%s7 + $0x150] sm:$0xff]
      %v420 = vld [vmem:[%s7 + $0x158] sm:$0xff]
      %v421 = vld [vmem:[%s7 + $0x160] sm:$0xff]
      %v422 = vld [vmem:[%s7 + $0x168] sm:$0xff]
      %v423 = vld [vmem:[%s7 + $0x170] sm:$0xff]
      %v424 = vld [vmem:[%s7 + $0x178] sm:$0xff]
      %v425 = vld [vmem:[%s7 + $0x180] sm:$0xff]
      %v426 = vld [vmem:[%s7 + $0x188] sm:$0xff]
      %v427 = vld [vmem:[%s7 + $0x190] sm:$0xff]
      %v428 = vld [vmem:[%s7 + $0x198] sm:$0xff]
      %v429 = vld [vmem:[%s7 + $0x1a0] sm:$0xff]
      %v430 = vld [vmem:[%s7 + $0x1a8] sm:$0xff]
      %v431 = vld [vmem:[%s7 + $0x1b0] sm:$0xff]
      %v432 = vld [vmem:[%s7 + $0x1b8] sm:$0xff]
      %v433 = vld [vmem:[%s7 + $0x1c0] sm:$0xff]
      %v434 = vld [vmem:[%s7 + $0x1c8] sm:$0xff]
      %v435 = vld [vmem:[%s7 + $0x1d0] sm:$0xff]
      %v436 = vld [vmem:[%s7 + $0x1d8] sm:$0xff]
      %v437 = vld [vmem:[%s7 + $0x1e0] sm:$0xff]
      %v438 = vld [vmem:[%s7 + $0x1e8] sm:$0xff]
      %v439 = vld [vmem:[%s7 + $0x1f0] sm:$0xff]
      %v440 = vld [vmem:[%s7 + $0x1f8] sm:$0xff]
      %v441 = vld [vmem:[%s7 + $0x200] sm:$0xff]
      %v442 = vld [vmem:[%s7 + $0x208] sm:$0xff]
      %v443 = vld [vmem:[%s7 + $0x210] sm:$0xff]
      %v444 = vld [vmem:[%s7 + $0x218] sm:$0xff]
      %v445 = vld [vmem:[%s7 + $0x220] sm:$0xff]
      %v446 = vld [vmem:[%s7 + $0x228] sm:$0xff]
      %v447 = vld [vmem:[%s7 + $0x230] sm:$0xff]
      %v448 = vld [vmem:[%s7 + $0x238] sm:$0xff]
      %v449 = vld [vmem:[%s7 + $0x240] sm:$0xff]
      %v450 = vld [vmem:[%s7 + $0x248] sm:$0xff]
      %v451 = vld [vmem:[%s7 + $0x250] sm:$0xff]
      %v452 = vld [vmem:[%s7 + $0x258] sm:$0xff]
      %v453 = vld [vmem:[%s7 + $0x260] sm:$0xff]
      %v454 = vld [vmem:[%s7 + $0x268] sm:$0xff]
      %v455 = vld [vmem:[%s7 + $0x270] sm:$0xff]
      %v456 = vld [vmem:[%s7 + $0x278] sm:$0xff]
      %v457 = vld [vmem:[%s7 + $0x280] sm:$0xff]
      %v458 = vld [vmem:[%s7 + $0x288] sm:$0xff]
      %v459 = vld [vmem:[%s7 + $0x290] sm:$0xff]
      %v460 = vld [vmem:[%s7 + $0x298] sm:$0xff]
      %v461 = vld [vmem:[%s7 + $0x2a0] sm:$0xff]
      %v462 = vld [vmem:[%s7 + $0x2a8] sm:$0xff]
      %v463 = vld [vmem:[%s7 + $0x2b0] sm:$0xff]
      %v464 = vld [vmem:[%s7 + $0x2b8] sm:$0xff]
      %v465 = vld [vmem:[%s7 + $0x2c0] sm:$0xff]
      %v466 = vld [vmem:[%s7 + $0x2c8] sm:$0xff]
      %v467 = vld [vmem:[%s7 + $0x2d0] sm:$0xff]
      %v468 = vld [vmem:[%s7 + $0x2d8] sm:$0xff]
      %v469 = vld [vmem:[%s7 + $0x2e0] sm:$0xff]
      %v470 = vld [vmem:[%s7 + $0x2e8] sm:$0xff]
      %v471 = vld [vmem:[%s7 + $0x2f0] sm:$0xff]
      %v472 = vld [vmem:[%s7 + $0x2f8] sm:$0xff]
      %v473 = vld [vmem:[%s7 + $0x300] sm:$0xff]
      %v474 = vld [vmem:[%s7 + $0x308] sm:$0xff]
      %v475 = vld [vmem:[%s7 + $0x310] sm:$0xff]
      %v476 = vld [vmem:[%s7 + $0x318] sm:$0xff]
      %v477 = vld [vmem:[%s7 + $0x320] sm:$0xff]
      %v478 = vld [vmem:[%s7 + $0x328] sm:$0xff]
      %v479 = vld [vmem:[%s7 + $0x330] sm:$0xff]
      %v480 = vld [vmem:[%s7 + $0x338] sm:$0xff]
      %v481 = vld [vmem:[%s7 + $0x340] sm:$0xff]
      %v482 = vld [vmem:[%s7 + $0x348] sm:$0xff]
      %v483 = vld [vmem:[%s7 + $0x350] sm:$0xff]
      %v484 = vld [vmem:[%s7 + $0x358] sm:$0xff]
      %v485 = vld [vmem:[%s7 + $0x360] sm:$0xff]
      %v486 = vld [vmem:[%s7 + $0x368] sm:$0xff]
      %v487 = vld [vmem:[%s7 + $0x370] sm:$0xff]
      %v488 = vld [vmem:[%s7 + $0x378] sm:$0xff]
      %v489 = vld [vmem:[%s7 + $0x380] sm:$0xff]
      %v490 = vld [vmem:[%s7 + $0x388] sm:$0xff]
      %v491 = vld [vmem:[%s7 + $0x390] sm:$0xff]
      %v492 = vld [vmem:[%s7 + $0x398] sm:$0xff]
      %v493 = vld [vmem:[%s7 + $0x3a0] sm:$0xff]
      %v494 = vld [vmem:[%s7 + $0x3a8] sm:$0xff]
      %v495 = vld [vmem:[%s7 + $0x3b0] sm:$0xff]
      %v496 = vld [vmem:[%s7 + $0x3b8] sm:$0xff]
      %v497 = vld [vmem:[%s7 + $0x3c0] sm:$0xff]
      %v498 = vld [vmem:[%s7 + $0x3c8] sm:$0xff]
      %v499 = vld [vmem:[%s7 + $0x3d0] sm:$0xff]
      %v500 = vld [vmem:[%s7 + $0x3d8] sm:$0xff]
      %v501 = vld [vmem:[%s7 + $0x3e0] sm:$0xff]
      %v502 = vld [vmem:[%s7 + $0x3e8] sm:$0xff]
      %v503 = vld [vmem:[%s7 + $0x3f0] sm:$0xff]
      %v504 = vld [vmem:[%s7 + $0x3f8] sm:$0xff]
      %v505 = vld [vmem:[%s8] sm:$0xf]
      %v507 = vlaneseq
      %v508 = vshrl.u32 %v507, 7
      %v509 = vsub.s32 0, %v508
      %v510 = vrot.slane %v505, %v509
      %v511 = vlaneseq
      %v512 = vshrl.u32 %v511, 7
      %v513 = vsub.s32 1, %v512
      %v514 = vrot.slane %v505, %v513
      %v515 = vlaneseq
      %v516 = vshrl.u32 %v515, 7
      %v517 = vsub.s32 2, %v516
      %v518 = vrot.slane %v505, %v517
      %v519 = vlaneseq
      %v520 = vshrl.u32 %v519, 7
      %v521 = vsub.s32 3, %v520
      %v522 = vrot.slane %v505, %v521
      %527 = vmatprep.subr.mxu0 %v378
      %528 = vmatpush1.msra.mxu0 %v377
      %529 = vmatprep.subr.mxu0 %v382
      %530 = vmatpush1.msra.mxu0 %v381
      %531 = vmatprep.subr.mxu0 %v386
      %532 = vmatpush1.msra.mxu0 %v385
      %533 = vmatprep.subr.mxu0 %v390
      %534 = vmatpush1.msra.mxu0 %v389
      %535 = vmatprep.subr.mxu0 %v394
      %536 = vmatpush1.msra.mxu0 %v393
      %537 = vmatprep.subr.mxu0 %v398
      %538 = vmatpush1.msra.mxu0 %v397
      %539 = vmatprep.subr.mxu0 %v402
      %540 = vmatpush1.msra.mxu0 %v401
      %541 = vmatprep.subr.mxu0 %v406
      %542 = vmatpush1.msra.mxu0 %v405
      %543 = vmatprep.subr.mxu0 %v410
      %544 = vmatpush1.msra.mxu0 %v409
      %545 = vmatprep.subr.mxu0 %v414
      %546 = vmatpush1.msra.mxu0 %v413
      %547 = vmatprep.subr.mxu0 %v418
      %548 = vmatpush1.msra.mxu0 %v417
      %549 = vmatprep.subr.mxu0 %v422
      %550 = vmatpush1.msra.mxu0 %v421
      %551 = vmatprep.subr.mxu0 %v426
      %552 = vmatpush1.msra.mxu0 %v425
      %553 = vmatprep.subr.mxu0 %v430
      %554 = vmatpush1.msra.mxu0 %v429
      %555 = vmatprep.subr.mxu0 %v434
      %556 = vmatpush1.msra.mxu0 %v433
      %557 = vmatprep.subr.mxu0 %v438
      %558 = vmatpush1.msra.mxu0 %v437
      %559 = vmatprep.subr.mxu0 %v442
      %560 = vmatpush1.msra.mxu0 %v441
      %561 = vmatprep.subr.mxu0 %v446
      %562 = vmatpush1.msra.mxu0 %v445
      %563 = vmatprep.subr.mxu0 %v450
      %564 = vmatpush1.msra.mxu0 %v449
      %565 = vmatprep.subr.mxu0 %v454
      %566 = vmatpush1.msra.mxu0 %v453
      %567 = vmatprep.subr.mxu0 %v458
      %568 = vmatpush1.msra.mxu0 %v457
      %569 = vmatprep.subr.mxu0 %v462
      %570 = vmatpush1.msra.mxu0 %v461
      %571 = vmatprep.subr.mxu0 %v466
      %572 = vmatpush1.msra.mxu0 %v465
      %573 = vmatprep.subr.mxu0 %v470
      %574 = vmatpush1.msra.mxu0 %v469
      %575 = vmatprep.subr.mxu0 %v474
      %576 = vmatpush1.msra.mxu0 %v473
      %577 = vmatprep.subr.mxu0 %v478
      %578 = vmatpush1.msra.mxu0 %v477
      %579 = vmatprep.subr.mxu0 %v482
      %580 = vmatpush1.msra.mxu0 %v481
      %581 = vmatprep.subr.mxu0 %v486
      %582 = vmatpush1.msra.mxu0 %v485
      %583 = vmatprep.subr.mxu0 %v490
      %584 = vmatpush1.msra.mxu0 %v489
      %585 = vmatprep.subr.mxu0 %v494
      %586 = vmatpush1.msra.mxu0 %v493
      %587 = vmatprep.subr.mxu0 %v498
      %588 = vmatpush1.msra.mxu0 %v497
      %589 = vmatprep.subr.mxu0 %v502
      %590 = vmatpush1.msra.mxu0 %v501
      %591 = vmatprep.mubr.f32.mxu0 %v375
      %592 = vmatmul.mubr.f32.gmra.mrb[0].mxu0 %v374
      %v593 = vpop.f32.mrb[0].mxu0
      %v594 = vadd.f32 %v510, %v593
      %v595 = vpop.f32.mrb[0].mxu0
      %v596 = vadd.f32 %v514, %v595
      %597 = vdwg.mxu0
      %598 = vmatprep.subr.mxu0 %v380
      %599 = vmatpush1.msra.mxu0 %v379
      %600 = vmatprep.subr.mxu0 %v384
      %601 = vmatpush1.msra.mxu0 %v383
      %602 = vmatprep.subr.mxu0 %v388
      %603 = vmatpush1.msra.mxu0 %v387
      %604 = vmatprep.subr.mxu0 %v392
      %605 = vmatpush1.msra.mxu0 %v391
      %606 = vmatprep.subr.mxu0 %v396
      %607 = vmatpush1.msra.mxu0 %v395
      %608 = vmatprep.subr.mxu0 %v400
      %609 = vmatpush1.msra.mxu0 %v399
      %610 = vmatprep.subr.mxu0 %v404
      %611 = vmatpush1.msra.mxu0 %v403
      %612 = vmatprep.subr.mxu0 %v408
      %613 = vmatpush1.msra.mxu0 %v407
      %614 = vmatprep.subr.mxu0 %v412
      %615 = vmatpush1.msra.mxu0 %v411
      %616 = vmatprep.subr.mxu0 %v416
      %617 = vmatpush1.msra.mxu0 %v415
      %618 = vmatprep.subr.mxu0 %v420
      %619 = vmatpush1.msra.mxu0 %v419
      %620 = vmatprep.subr.mxu0 %v424
      %621 = vmatpush1.msra.mxu0 %v423
      %622 = vmatprep.subr.mxu0 %v428
      %623 = vmatpush1.msra.mxu0 %v427
      %624 = vmatprep.subr.mxu0 %v432
      %625 = vmatpush1.msra.mxu0 %v431
      %626 = vmatprep.subr.mxu0 %v436
      %627 = vmatpush1.msra.mxu0 %v435
      %628 = vmatprep.subr.mxu0 %v440
      %629 = vmatpush1.msra.mxu0 %v439
      %630 = vmatprep.subr.mxu0 %v444
      %631 = vmatpush1.msra.mxu0 %v443
      %632 = vmatprep.subr.mxu0 %v448
      %633 = vmatpush1.msra.mxu0 %v447
      %634 = vmatprep.subr.mxu0 %v452
      %635 = vmatpush1.msra.mxu0 %v451
      %636 = vmatprep.subr.mxu0 %v456
      %637 = vmatpush1.msra.mxu0 %v455
      %638 = vmatprep.subr.mxu0 %v460
      %639 = vmatpush1.msra.mxu0 %v459
      %640 = vmatprep.subr.mxu0 %v464
      %641 = vmatpush1.msra.mxu0 %v463
      %642 = vmatprep.subr.mxu0 %v468
      %643 = vmatpush1.msra.mxu0 %v467
      %644 = vmatprep.subr.mxu0 %v472
      %645 = vmatpush1.msra.mxu0 %v471
      %646 = vmatprep.subr.mxu0 %v476
      %647 = vmatpush1.msra.mxu0 %v475
      %648 = vmatprep.subr.mxu0 %v480
      %649 = vmatpush1.msra.mxu0 %v479
      %650 = vmatprep.subr.mxu0 %v484
      %651 = vmatpush1.msra.mxu0 %v483
      %652 = vmatprep.subr.mxu0 %v488
      %653 = vmatpush1.msra.mxu0 %v487
      %654 = vmatprep.subr.mxu0 %v492
      %655 = vmatpush1.msra.mxu0 %v491
      %656 = vmatprep.subr.mxu0 %v496
      %657 = vmatpush1.msra.mxu0 %v495
      %658 = vmatprep.subr.mxu0 %v500
      %659 = vmatpush1.msra.mxu0 %v499
      %660 = vmatprep.subr.mxu0 %v504
      %661 = vmatpush1.msra.mxu0 %v503
      %662 = vmatprep.mubr.f32.mxu0 %v375
      %663 = vmatmul.mubr.f32.gmra.mrb[0].mxu0 %v374
      %v664 = vpop.f32.mrb[0].mxu0
      %v665 = vadd.f32 %v518, %v664
      %v666 = vpop.f32.mrb[0].mxu0
      %v667 = vadd.f32 %v522, %v666
      %668 = vdwg.mxu0
      %v669 = vxor.u32 %v594, 2147483648
      %v670 = vmul.f32 %v669, 1.442695
      %v671 = vpow.pop %v670
      %v672 = vadd.f32 %v671, 1.0
      %v673 = vrcp.pop %v672
      %v674 = vmul.f32 1.0, %v673
      %v675 = vxor.u32 %v596, 2147483648
      %v676 = vmul.f32 %v675, 1.442695
      %v677 = vpow.pop %v676
      %v678 = vadd.f32 %v677, 1.0
      %v679 = vrcp.pop %v678
      %v680 = vmul.f32 1.0, %v679
      %v681 = vtanh.pop %v665
      %v682 = vxor.u32 %v667, 2147483648
      %v683 = vmul.f32 %v682, 1.442695
      %v684 = vpow.pop %v683
      %v685 = vadd.f32 %v684, 1.0
      %v686 = vrcp.pop %v685
      %v687 = vmul.f32 1.0, %v686
      %v688 = vmul.f32 %v680, %v376
      %v689 = vmul.f32 %v674, %v681
      %v690 = vadd.f32 %v688, %v689
      %v691 = vtanh.pop %v690
      %v692 = vmul.f32 %v687, %v691
      %v693 = vld [vmem:[#allocation5] sm:$0xff]
      %v694 = vld [vmem:[%s9] sm:$0xff]
      %v695 = vld [vmem:[%s9 + $0x8] sm:$0xff]
      %v696 = vld [vmem:[%s9 + $0x10] sm:$0xff]
      %v697 = vld [vmem:[%s9 + $0x18] sm:$0xff]
      %v698 = vld [vmem:[%s9 + $0x20] sm:$0xff]
      %v699 = vld [vmem:[%s9 + $0x28] sm:$0xff]
      %v700 = vld [vmem:[%s9 + $0x30] sm:$0xff]
      %v701 = vld [vmem:[%s9 + $0x38] sm:$0xff]
      %v702 = vld [vmem:[%s9 + $0x40] sm:$0xff]
      %v703 = vld [vmem:[%s9 + $0x48] sm:$0xff]
      %v704 = vld [vmem:[%s9 + $0x50] sm:$0xff]
      %v705 = vld [vmem:[%s9 + $0x58] sm:$0xff]
      %v706 = vld [vmem:[%s9 + $0x60] sm:$0xff]
      %v707 = vld [vmem:[%s9 + $0x68] sm:$0xff]
      %v708 = vld [vmem:[%s9 + $0x70] sm:$0xff]
      %v709 = vld [vmem:[%s9 + $0x78] sm:$0xff]
      %v710 = vld [vmem:[%s9 + $0x80] sm:$0xff]
      %v711 = vld [vmem:[%s9 + $0x88] sm:$0xff]
      %v712 = vld [vmem:[%s9 + $0x90] sm:$0xff]
      %v713 = vld [vmem:[%s9 + $0x98] sm:$0xff]
      %v714 = vld [vmem:[%s9 + $0xa0] sm:$0xff]
      %v715 = vld [vmem:[%s9 + $0xa8] sm:$0xff]
      %v716 = vld [vmem:[%s9 + $0xb0] sm:$0xff]
      %v717 = vld [vmem:[%s9 + $0xb8] sm:$0xff]
      %v718 = vld [vmem:[%s9 + $0xc0] sm:$0xff]
      %v719 = vld [vmem:[%s9 + $0xc8] sm:$0xff]
      %v720 = vld [vmem:[%s9 + $0xd0] sm:$0xff]
      %v721 = vld [vmem:[%s9 + $0xd8] sm:$0xff]
      %v722 = vld [vmem:[%s9 + $0xe0] sm:$0xff]
      %v723 = vld [vmem:[%s9 + $0xe8] sm:$0xff]
      %v724 = vld [vmem:[%s9 + $0xf0] sm:$0xff]
      %v725 = vld [vmem:[%s9 + $0xf8] sm:$0xff]
      %v726 = vld [vmem:[%s9 + $0x100] sm:$0xff]
      %v727 = vld [vmem:[%s9 + $0x108] sm:$0xff]
      %v728 = vld [vmem:[%s9 + $0x110] sm:$0xff]
      %v729 = vld [vmem:[%s9 + $0x118] sm:$0xff]
      %v730 = vld [vmem:[%s9 + $0x120] sm:$0xff]
      %v731 = vld [vmem:[%s9 + $0x128] sm:$0xff]
      %v732 = vld [vmem:[%s9 + $0x130] sm:$0xff]
      %v733 = vld [vmem:[%s9 + $0x138] sm:$0xff]
      %v734 = vld [vmem:[%s9 + $0x140] sm:$0xff]
      %v735 = vld [vmem:[%s9 + $0x148] sm:$0xff]
      %v736 = vld [vmem:[%s9 + $0x150] sm:$0xff]
      %v737 = vld [vmem:[%s9 + $0x158] sm:$0xff]
      %v738 = vld [vmem:[%s9 + $0x160] sm:$0xff]
      %v739 = vld [vmem:[%s9 + $0x168] sm:$0xff]
      %v740 = vld [vmem:[%s9 + $0x170] sm:$0xff]
      %v741 = vld [vmem:[%s9 + $0x178] sm:$0xff]
      %v742 = vld [vmem:[%s9 + $0x180] sm:$0xff]
      %v743 = vld [vmem:[%s9 + $0x188] sm:$0xff]
      %v744 = vld [vmem:[%s9 + $0x190] sm:$0xff]
      %v745 = vld [vmem:[%s9 + $0x198] sm:$0xff]
      %v746 = vld [vmem:[%s9 + $0x1a0] sm:$0xff]
      %v747 = vld [vmem:[%s9 + $0x1a8] sm:$0xff]
      %v748 = vld [vmem:[%s9 + $0x1b0] sm:$0xff]
      %v749 = vld [vmem:[%s9 + $0x1b8] sm:$0xff]
      %v750 = vld [vmem:[%s9 + $0x1c0] sm:$0xff]
      %v751 = vld [vmem:[%s9 + $0x1c8] sm:$0xff]
      %v752 = vld [vmem:[%s9 + $0x1d0] sm:$0xff]
      %v753 = vld [vmem:[%s9 + $0x1d8] sm:$0xff]
      %v754 = vld [vmem:[%s9 + $0x1e0] sm:$0xff]
      %v755 = vld [vmem:[%s9 + $0x1e8] sm:$0xff]
      %v756 = vld [vmem:[%s9 + $0x1f0] sm:$0xff]
      %v757 = vld [vmem:[%s9 + $0x1f8] sm:$0xff]
      %v758 = vld [vmem:[%s9 + $0x200] sm:$0xff]
      %v759 = vld [vmem:[%s9 + $0x208] sm:$0xff]
      %v760 = vld [vmem:[%s9 + $0x210] sm:$0xff]
      %v761 = vld [vmem:[%s9 + $0x218] sm:$0xff]
      %v762 = vld [vmem:[%s9 + $0x220] sm:$0xff]
      %v763 = vld [vmem:[%s9 + $0x228] sm:$0xff]
      %v764 = vld [vmem:[%s9 + $0x230] sm:$0xff]
      %v765 = vld [vmem:[%s9 + $0x238] sm:$0xff]
      %v766 = vld [vmem:[%s9 + $0x240] sm:$0xff]
      %v767 = vld [vmem:[%s9 + $0x248] sm:$0xff]
      %v768 = vld [vmem:[%s9 + $0x250] sm:$0xff]
      %v769 = vld [vmem:[%s9 + $0x258] sm:$0xff]
      %v770 = vld [vmem:[%s9 + $0x260] sm:$0xff]
      %v771 = vld [vmem:[%s9 + $0x268] sm:$0xff]
      %v772 = vld [vmem:[%s9 + $0x270] sm:$0xff]
      %v773 = vld [vmem:[%s9 + $0x278] sm:$0xff]
      %v774 = vld [vmem:[%s9 + $0x280] sm:$0xff]
      %v775 = vld [vmem:[%s9 + $0x288] sm:$0xff]
      %v776 = vld [vmem:[%s9 + $0x290] sm:$0xff]
      %v777 = vld [vmem:[%s9 + $0x298] sm:$0xff]
      %v778 = vld [vmem:[%s9 + $0x2a0] sm:$0xff]
      %v779 = vld [vmem:[%s9 + $0x2a8] sm:$0xff]
      %v780 = vld [vmem:[%s9 + $0x2b0] sm:$0xff]
      %v781 = vld [vmem:[%s9 + $0x2b8] sm:$0xff]
      %v782 = vld [vmem:[%s9 + $0x2c0] sm:$0xff]
      %v783 = vld [vmem:[%s9 + $0x2c8] sm:$0xff]
      %v784 = vld [vmem:[%s9 + $0x2d0] sm:$0xff]
      %v785 = vld [vmem:[%s9 + $0x2d8] sm:$0xff]
      %v786 = vld [vmem:[%s9 + $0x2e0] sm:$0xff]
      %v787 = vld [vmem:[%s9 + $0x2e8] sm:$0xff]
      %v788 = vld [vmem:[%s9 + $0x2f0] sm:$0xff]
      %v789 = vld [vmem:[%s9 + $0x2f8] sm:$0xff]
      %v790 = vld [vmem:[%s9 + $0x300] sm:$0xff]
      %v791 = vld [vmem:[%s9 + $0x308] sm:$0xff]
      %v792 = vld [vmem:[%s9 + $0x310] sm:$0xff]
      %v793 = vld [vmem:[%s9 + $0x318] sm:$0xff]
      %v794 = vld [vmem:[%s9 + $0x320] sm:$0xff]
      %v795 = vld [vmem:[%s9 + $0x328] sm:$0xff]
      %v796 = vld [vmem:[%s9 + $0x330] sm:$0xff]
      %v797 = vld [vmem:[%s9 + $0x338] sm:$0xff]
      %v798 = vld [vmem:[%s9 + $0x340] sm:$0xff]
      %v799 = vld [vmem:[%s9 + $0x348] sm:$0xff]
      %v800 = vld [vmem:[%s9 + $0x350] sm:$0xff]
      %v801 = vld [vmem:[%s9 + $0x358] sm:$0xff]
      %v802 = vld [vmem:[%s9 + $0x360] sm:$0xff]
      %v803 = vld [vmem:[%s9 + $0x368] sm:$0xff]
      %v804 = vld [vmem:[%s9 + $0x370] sm:$0xff]
      %v805 = vld [vmem:[%s9 + $0x378] sm:$0xff]
      %v806 = vld [vmem:[%s9 + $0x380] sm:$0xff]
      %v807 = vld [vmem:[%s9 + $0x388] sm:$0xff]
      %v808 = vld [vmem:[%s9 + $0x390] sm:$0xff]
      %v809 = vld [vmem:[%s9 + $0x398] sm:$0xff]
      %v810 = vld [vmem:[%s9 + $0x3a0] sm:$0xff]
      %v811 = vld [vmem:[%s9 + $0x3a8] sm:$0xff]
      %v812 = vld [vmem:[%s9 + $0x3b0] sm:$0xff]
      %v813 = vld [vmem:[%s9 + $0x3b8] sm:$0xff]
      %v814 = vld [vmem:[%s9 + $0x3c0] sm:$0xff]
      %v815 = vld [vmem:[%s9 + $0x3c8] sm:$0xff]
      %v816 = vld [vmem:[%s9 + $0x3d0] sm:$0xff]
      %v817 = vld [vmem:[%s9 + $0x3d8] sm:$0xff]
      %v818 = vld [vmem:[%s9 + $0x3e0] sm:$0xff]
      %v819 = vld [vmem:[%s9 + $0x3e8] sm:$0xff]
      %v820 = vld [vmem:[%s9 + $0x3f0] sm:$0xff]
      %v821 = vld [vmem:[%s9 + $0x3f8] sm:$0xff]
      %v822 = vld [vmem:[%s10] sm:$0xf]
      %v824 = vlaneseq
      %v825 = vshrl.u32 %v824, 7
      %v826 = vsub.s32 0, %v825
      %v827 = vrot.slane %v822, %v826
      %v828 = vlaneseq
      %v829 = vshrl.u32 %v828, 7
      %v830 = vsub.s32 1, %v829
      %v831 = vrot.slane %v822, %v830
      %v832 = vlaneseq
      %v833 = vshrl.u32 %v832, 7
      %v834 = vsub.s32 2, %v833
      %v835 = vrot.slane %v822, %v834
      %v836 = vlaneseq
      %v837 = vshrl.u32 %v836, 7
      %v838 = vsub.s32 3, %v837
      %v839 = vrot.slane %v822, %v838
      %844 = vmatprep.subr.mxu0 %v695
      %845 = vmatpush1.msra.mxu0 %v694
      %846 = vmatprep.subr.mxu0 %v699
      %847 = vmatpush1.msra.mxu0 %v698
      %848 = vmatprep.subr.mxu0 %v703
      %849 = vmatpush1.msra.mxu0 %v702
      %850 = vmatprep.subr.mxu0 %v707
      %851 = vmatpush1.msra.mxu0 %v706
      %852 = vmatprep.subr.mxu0 %v711
      %853 = vmatpush1.msra.mxu0 %v710
      %854 = vmatprep.subr.mxu0 %v715
      %855 = vmatpush1.msra.mxu0 %v714
      %856 = vmatprep.subr.mxu0 %v719
      %857 = vmatpush1.msra.mxu0 %v718
      %858 = vmatprep.subr.mxu0 %v723
      %859 = vmatpush1.msra.mxu0 %v722
      %860 = vmatprep.subr.mxu0 %v727
      %861 = vmatpush1.msra.mxu0 %v726
      %862 = vmatprep.subr.mxu0 %v731
      %863 = vmatpush1.msra.mxu0 %v730
      %864 = vmatprep.subr.mxu0 %v735
      %865 = vmatpush1.msra.mxu0 %v734
      %866 = vmatprep.subr.mxu0 %v739
      %867 = vmatpush1.msra.mxu0 %v738
      %868 = vmatprep.subr.mxu0 %v743
      %869 = vmatpush1.msra.mxu0 %v742
      %870 = vmatprep.subr.mxu0 %v747
      %871 = vmatpush1.msra.mxu0 %v746
      %872 = vmatprep.subr.mxu0 %v751
      %873 = vmatpush1.msra.mxu0 %v750
      %874 = vmatprep.subr.mxu0 %v755
      %875 = vmatpush1.msra.mxu0 %v754
      %876 = vmatprep.subr.mxu0 %v759
      %877 = vmatpush1.msra.mxu0 %v758
      %878 = vmatprep.subr.mxu0 %v763
      %879 = vmatpush1.msra.mxu0 %v762
      %880 = vmatprep.subr.mxu0 %v767
      %881 = vmatpush1.msra.mxu0 %v766
      %882 = vmatprep.subr.mxu0 %v771
      %883 = vmatpush1.msra.mxu0 %v770
      %884 = vmatprep.subr.mxu0 %v775
      %885 = vmatpush1.msra.mxu0 %v774
      %886 = vmatprep.subr.mxu0 %v779
      %887 = vmatpush1.msra.mxu0 %v778
      %888 = vmatprep.subr.mxu0 %v783
      %889 = vmatpush1.msra.mxu0 %v782
      %890 = vmatprep.subr.mxu0 %v787
      %891 = vmatpush1.msra.mxu0 %v786
      %892 = vmatprep.subr.mxu0 %v791
      %893 = vmatpush1.msra.mxu0 %v790
      %894 = vmatprep.subr.mxu0 %v795
      %895 = vmatpush1.msra.mxu0 %v794
      %896 = vmatprep.subr.mxu0 %v799
      %897 = vmatpush1.msra.mxu0 %v798
      %898 = vmatprep.subr.mxu0 %v803
      %899 = vmatpush1.msra.mxu0 %v802
      %900 = vmatprep.subr.mxu0 %v807
      %901 = vmatpush1.msra.mxu0 %v806
      %902 = vmatprep.subr.mxu0 %v811
      %903 = vmatpush1.msra.mxu0 %v810
      %904 = vmatprep.subr.mxu0 %v815
      %905 = vmatpush1.msra.mxu0 %v814
      %906 = vmatprep.subr.mxu0 %v819
      %907 = vmatpush1.msra.mxu0 %v818
      %908 = vmatprep.mubr.f32.mxu0 %v72
      %909 = vmatmul.mubr.f32.gmra.mrb[0].mxu0 %v692
      %v910 = vpop.f32.mrb[0].mxu0
      %v911 = vadd.f32 %v827, %v910
      %v912 = vpop.f32.mrb[0].mxu0
      %v913 = vadd.f32 %v831, %v912
      %914 = vdwg.mxu0
      %915 = vmatprep.subr.mxu0 %v697
      %916 = vmatpush1.msra.mxu0 %v696
      %917 = vmatprep.subr.mxu0 %v701
      %918 = vmatpush1.msra.mxu0 %v700
      %919 = vmatprep.subr.mxu0 %v705
      %920 = vmatpush1.msra.mxu0 %v704
      %921 = vmatprep.subr.mxu0 %v709
      %922 = vmatpush1.msra.mxu0 %v708
      %923 = vmatprep.subr.mxu0 %v713
      %924 = vmatpush1.msra.mxu0 %v712
      %925 = vmatprep.subr.mxu0 %v717
      %926 = vmatpush1.msra.mxu0 %v716
      %927 = vmatprep.subr.mxu0 %v721
      %928 = vmatpush1.msra.mxu0 %v720
      %929 = vmatprep.subr.mxu0 %v725
      %930 = vmatpush1.msra.mxu0 %v724
      %931 = vmatprep.subr.mxu0 %v729
      %932 = vmatpush1.msra.mxu0 %v728
      %933 = vmatprep.subr.mxu0 %v733
      %934 = vmatpush1.msra.mxu0 %v732
      %935 = vmatprep.subr.mxu0 %v737
      %936 = vmatpush1.msra.mxu0 %v736
      %937 = vmatprep.subr.mxu0 %v741
      %938 = vmatpush1.msra.mxu0 %v740
      %939 = vmatprep.subr.mxu0 %v745
      %940 = vmatpush1.msra.mxu0 %v744
      %941 = vmatprep.subr.mxu0 %v749
      %942 = vmatpush1.msra.mxu0 %v748
      %943 = vmatprep.subr.mxu0 %v753
      %944 = vmatpush1.msra.mxu0 %v752
      %945 = vmatprep.subr.mxu0 %v757
      %946 = vmatpush1.msra.mxu0 %v756
      %947 = vmatprep.subr.mxu0 %v761
      %948 = vmatpush1.msra.mxu0 %v760
      %949 = vmatprep.subr.mxu0 %v765
      %950 = vmatpush1.msra.mxu0 %v764
      %951 = vmatprep.subr.mxu0 %v769
      %952 = vmatpush1.msra.mxu0 %v768
      %953 = vmatprep.subr.mxu0 %v773
      %954 = vmatpush1.msra.mxu0 %v772
      %955 = vmatprep.subr.mxu0 %v777
      %956 = vmatpush1.msra.mxu0 %v776
      %957 = vmatprep.subr.mxu0 %v781
      %958 = vmatpush1.msra.mxu0 %v780
      %959 = vmatprep.subr.mxu0 %v785
      %960 = vmatpush1.msra.mxu0 %v784
      %961 = vmatprep.subr.mxu0 %v789
      %962 = vmatpush1.msra.mxu0 %v788
      %963 = vmatprep.subr.mxu0 %v793
      %964 = vmatpush1.msra.mxu0 %v792
      %965 = vmatprep.subr.mxu0 %v797
      %966 = vmatpush1.msra.mxu0 %v796
      %967 = vmatprep.subr.mxu0 %v801
      %968 = vmatpush1.msra.mxu0 %v800
      %969 = vmatprep.subr.mxu0 %v805
      %970 = vmatpush1.msra.mxu0 %v804
      %971 = vmatprep.subr.mxu0 %v809
      %972 = vmatpush1.msra.mxu0 %v808
      %973 = vmatprep.subr.mxu0 %v813
      %974 = vmatpush1.msra.mxu0 %v812
      %975 = vmatprep.subr.mxu0 %v817
      %976 = vmatpush1.msra.mxu0 %v816
      %977 = vmatprep.subr.mxu0 %v821
      %978 = vmatpush1.msra.mxu0 %v820
      %979 = vmatprep.mubr.f32.mxu0 %v72
      %980 = vmatmul.mubr.f32.gmra.mrb[0].mxu0 %v692
      %v981 = vpop.f32.mrb[0].mxu0
      %v982 = vadd.f32 %v835, %v981
      %v983 = vpop.f32.mrb[0].mxu0
      %v984 = vadd.f32 %v839, %v983
      %985 = vdwg.mxu0
      %v986 = vxor.u32 %v911, 2147483648
      %v987 = vmul.f32 %v986, 1.442695
      %v988 = vpow.pop %v987
      %v989 = vadd.f32 %v988, 1.0
      %v990 = vrcp.pop %v989
      %v991 = vmul.f32 1.0, %v990
      %v992 = vxor.u32 %v913, 2147483648
      %v993 = vmul.f32 %v992, 1.442695
      %v994 = vpow.pop %v993
      %v995 = vadd.f32 %v994, 1.0
      %v996 = vrcp.pop %v995
      %v997 = vmul.f32 1.0, %v996
      %v998 = vtanh.pop %v982
      %v999 = vxor.u32 %v984, 2147483648
      %v1000 = vmul.f32 %v999, 1.442695
      %v1001 = vpow.pop %v1000
      %v1002 = vadd.f32 %v1001, 1.0
      %v1003 = vrcp.pop %v1002
      %v1004 = vmul.f32 1.0, %v1003
      %v1005 = vmul.f32 %v997, %v693
      %v1006 = vmul.f32 %v991, %v998
      %v1007 = vadd.f32 %v1005, %v1006
      %v1008 = vtanh.pop %v1007
      %v1009 = vmul.f32 %v1004, %v1008
      %1010 = vst [vmem:[#allocation2] sm:$0xff] %v692
      %1011 = vst [vmem:[#allocation3] sm:$0xff] %v690
      %1012 = vst [vmem:[#allocation4] sm:$0xff] %v1009
      %1013 = vst [vmem:[#allocation5] sm:$0xff] %v1007
      %v1014 = vld [vmem:[#allocation2] sm:$0xff]
      %v1015 = vld [vmem:[#allocation3] sm:$0xff]
      %v1016 = vld [vmem:[%s7] sm:$0xff]
      %v1017 = vld [vmem:[%s7 + $0x8] sm:$0xff]
      %v1018 = vld [vmem:[%s7 + $0x10] sm:$0xff]
      %v1019 = vld [vmem:[%s7 + $0x18] sm:$0xff]
      %v1020 = vld [vmem:[%s7 + $0x20] sm:$0xff]
      %v1021 = vld [vmem:[%s7 + $0x28] sm:$0xff]
      %v1022 = vld [vmem:[%s7 + $0x30] sm:$0xff]
      %v1023 = vld [vmem:[%s7 + $0x38] sm:$0xff]
      %v1024 = vld [vmem:[%s7 + $0x40] sm:$0xff]
      %v1025 = vld [vmem:[%s7 + $0x48] sm:$0xff]
      %v1026 = vld [vmem:[%s7 + $0x50] sm:$0xff]
      %v1027 = vld [vmem:[%s7 + $0x58] sm:$0xff]
      %v1028 = vld [vmem:[%s7 + $0x60] sm:$0xff]
      %v1029 = vld [vmem:[%s7 + $0x68] sm:$0xff]
      %v1030 = vld [vmem:[%s7 + $0x70] sm:$0xff]
      %v1031 = vld [vmem:[%s7 + $0x78] sm:$0xff]
      %v1032 = vld [vmem:[%s7 + $0x80] sm:$0xff]
      %v1033 = vld [vmem:[%s7 + $0x88] sm:$0xff]
      %v1034 = vld [vmem:[%s7 + $0x90] sm:$0xff]
      %v1035 = vld [vmem:[%s7 + $0x98] sm:$0xff]
      %v1036 = vld [vmem:[%s7 + $0xa0] sm:$0xff]
      %v1037 = vld [vmem:[%s7 + $0xa8] sm:$0xff]
      %v1038 = vld [vmem:[%s7 + $0xb0] sm:$0xff]
      %v1039 = vld [vmem:[%s7 + $0xb8] sm:$0xff]
      %v1040 = vld [vmem:[%s7 + $0xc0] sm:$0xff]
      %v1041 = vld [vmem:[%s7 + $0xc8] sm:$0xff]
      %v1042 = vld [vmem:[%s7 + $0xd0] sm:$0xff]
      %v1043 = vld [vmem:[%s7 + $0xd8] sm:$0xff]
      %v1044 = vld [vmem:[%s7 + $0xe0] sm:$0xff]
      %v1045 = vld [vmem:[%s7 + $0xe8] sm:$0xff]
      %v1046 = vld [vmem:[%s7 + $0xf0] sm:$0xff]
      %v1047 = vld [vmem:[%s7 + $0xf8] sm:$0xff]
      %v1048 = vld [vmem:[%s7 + $0x100] sm:$0xff]
      %v1049 = vld [vmem:[%s7 + $0x108] sm:$0xff]
      %v1050 = vld [vmem:[%s7 + $0x110] sm:$0xff]
      %v1051 = vld [vmem:[%s7 + $0x118] sm:$0xff]
      %v1052 = vld [vmem:[%s7 + $0x120] sm:$0xff]
      %v1053 = vld [vmem:[%s7 + $0x128] sm:$0xff]
      %v1054 = vld [vmem:[%s7 + $0x130] sm:$0xff]
      %v1055 = vld [vmem:[%s7 + $0x138] sm:$0xff]
      %v1056 = vld [vmem:[%s7 + $0x140] sm:$0xff]
      %v1057 = vld [vmem:[%s7 + $0x148] sm:$0xff]
      %v1058 = vld [vmem:[%s7 + $0x150] sm:$0xff]
      %v1059 = vld [vmem:[%s7 + $0x158] sm:$0xff]
      %v1060 = vld [vmem:[%s7 + $0x160] sm:$0xff]
      %v1061 = vld [vmem:[%s7 + $0x168] sm:$0xff]
      %v1062 = vld [vmem:[%s7 + $0x170] sm:$0xff]
      %v1063 = vld [vmem:[%s7 + $0x178] sm:$0xff]
      %v1064 = vld [vmem:[%s7 + $0x180] sm:$0xff]
      %v1065 = vld [vmem:[%s7 + $0x188] sm:$0xff]
      %v1066 = vld [vmem:[%s7 + $0x190] sm:$0xff]
      %v1067 = vld [vmem:[%s7 + $0x198] sm:$0xff]
      %v1068 = vld [vmem:[%s7 + $0x1a0] sm:$0xff]
      %v1069 = vld [vmem:[%s7 + $0x1a8] sm:$0xff]
      %v1070 = vld [vmem:[%s7 + $0x1b0] sm:$0xff]
      %v1071 = vld [vmem:[%s7 + $0x1b8] sm:$0xff]
      %v1072 = vld [vmem:[%s7 + $0x1c0] sm:$0xff]
      %v1073 = vld [vmem:[%s7 + $0x1c8] sm:$0xff]
      %v1074 = vld [vmem:[%s7 + $0x1d0] sm:$0xff]
      %v1075 = vld [vmem:[%s7 + $0x1d8] sm:$0xff]
      %v1076 = vld [vmem:[%s7 + $0x1e0] sm:$0xff]
      %v1077 = vld [vmem:[%s7 + $0x1e8] sm:$0xff]
      %v1078 = vld [vmem:[%s7 + $0x1f0] sm:$0xff]
      %v1079 = vld [vmem:[%s7 + $0x1f8] sm:$0xff]
      %v1080 = vld [vmem:[%s7 + $0x200] sm:$0xff]
      %v1081 = vld [vmem:[%s7 + $0x208] sm:$0xff]
      %v1082 = vld [vmem:[%s7 + $0x210] sm:$0xff]
      %v1083 = vld [vmem:[%s7 + $0x218] sm:$0xff]
      %v1084 = vld [vmem:[%s7 + $0x220] sm:$0xff]
      %v1085 = vld [vmem:[%s7 + $0x228] sm:$0xff]
      %v1086 = vld [vmem:[%s7 + $0x230] sm:$0xff]
      %v1087 = vld [vmem:[%s7 + $0x238] sm:$0xff]
      %v1088 = vld [vmem:[%s7 + $0x240] sm:$0xff]
      %v1089 = vld [vmem:[%s7 + $0x248] sm:$0xff]
      %v1090 = vld [vmem:[%s7 + $0x250] sm:$0xff]
      %v1091 = vld [vmem:[%s7 + $0x258] sm:$0xff]
      %v1092 = vld [vmem:[%s7 + $0x260] sm:$0xff]
      %v1093 = vld [vmem:[%s7 + $0x268] sm:$0xff]
      %v1094 = vld [vmem:[%s7 + $0x270] sm:$0xff]
      %v1095 = vld [vmem:[%s7 + $0x278] sm:$0xff]
      %v1096 = vld [vmem:[%s7 + $0x280] sm:$0xff]
      %v1097 = vld [vmem:[%s7 + $0x288] sm:$0xff]
      %v1098 = vld [vmem:[%s7 + $0x290] sm:$0xff]
      %v1099 = vld [vmem:[%s7 + $0x298] sm:$0xff]
      %v1100 = vld [vmem:[%s7 + $0x2a0] sm:$0xff]
      %v1101 = vld [vmem:[%s7 + $0x2a8] sm:$0xff]
      %v1102 = vld [vmem:[%s7 + $0x2b0] sm:$0xff]
      %v1103 = vld [vmem:[%s7 + $0x2b8] sm:$0xff]
      %v1104 = vld [vmem:[%s7 + $0x2c0] sm:$0xff]
      %v1105 = vld [vmem:[%s7 + $0x2c8] sm:$0xff]
      %v1106 = vld [vmem:[%s7 + $0x2d0] sm:$0xff]
      %v1107 = vld [vmem:[%s7 + $0x2d8] sm:$0xff]
      %v1108 = vld [vmem:[%s7 + $0x2e0] sm:$0xff]
      %v1109 = vld [vmem:[%s7 + $0x2e8] sm:$0xff]
      %v1110 = vld [vmem:[%s7 + $0x2f0] sm:$0xff]
      %v1111 = vld [vmem:[%s7 + $0x2f8] sm:$0xff]
      %v1112 = vld [vmem:[%s7 + $0x300] sm:$0xff]
      %v1113 = vld [vmem:[%s7 + $0x308] sm:$0xff]
      %v1114 = vld [vmem:[%s7 + $0x310] sm:$0xff]
      %v1115 = vld [vmem:[%s7 + $0x318] sm:$0xff]
      %v1116 = vld [vmem:[%s7 + $0x320] sm:$0xff]
      %v1117 = vld [vmem:[%s7 + $0x328] sm:$0xff]
      %v1118 = vld [vmem:[%s7 + $0x330] sm:$0xff]
      %v1119 = vld [vmem:[%s7 + $0x338] sm:$0xff]
      %v1120 = vld [vmem:[%s7 + $0x340] sm:$0xff]
      %v1121 = vld [vmem:[%s7 + $0x348] sm:$0xff]
      %v1122 = vld [vmem:[%s7 + $0x350] sm:$0xff]
      %v1123 = vld [vmem:[%s7 + $0x358] sm:$0xff]
      %v1124 = vld [vmem:[%s7 + $0x360] sm:$0xff]
      %v1125 = vld [vmem:[%s7 + $0x368] sm:$0xff]
      %v1126 = vld [vmem:[%s7 + $0x370] sm:$0xff]
      %v1127 = vld [vmem:[%s7 + $0x378] sm:$0xff]
      %v1128 = vld [vmem:[%s7 + $0x380] sm:$0xff]
      %v1129 = vld [vmem:[%s7 + $0x388] sm:$0xff]
      %v1130 = vld [vmem:[%s7 + $0x390] sm:$0xff]
      %v1131 = vld [vmem:[%s7 + $0x398] sm:$0xff]
      %v1132 = vld [vmem:[%s7 + $0x3a0] sm:$0xff]
      %v1133 = vld [vmem:[%s7 + $0x3a8] sm:$0xff]
      %v1134 = vld [vmem:[%s7 + $0x3b0] sm:$0xff]
      %v1135 = vld [vmem:[%s7 + $0x3b8] sm:$0xff]
      %v1136 = vld [vmem:[%s7 + $0x3c0] sm:$0xff]
      %v1137 = vld [vmem:[%s7 + $0x3c8] sm:$0xff]
      %v1138 = vld [vmem:[%s7 + $0x3d0] sm:$0xff]
      %v1139 = vld [vmem:[%s7 + $0x3d8] sm:$0xff]
      %v1140 = vld [vmem:[%s7 + $0x3e0] sm:$0xff]
      %v1141 = vld [vmem:[%s7 + $0x3e8] sm:$0xff]
      %v1142 = vld [vmem:[%s7 + $0x3f0] sm:$0xff]
      %v1143 = vld [vmem:[%s7 + $0x3f8] sm:$0xff]
      %v1144 = vld [vmem:[%s8] sm:$0xf]
      %v1146 = vlaneseq
      %v1147 = vshrl.u32 %v1146, 7
      %v1148 = vsub.s32 0, %v1147
      %v1149 = vrot.slane %v1144, %v1148
      %v1150 = vlaneseq
      %v1151 = vshrl.u32 %v1150, 7
      %v1152 = vsub.s32 1, %v1151
      %v1153 = vrot.slane %v1144, %v1152
      %v1154 = vlaneseq
      %v1155 = vshrl.u32 %v1154, 7
      %v1156 = vsub.s32 2, %v1155
      %v1157 = vrot.slane %v1144, %v1156
      %v1158 = vlaneseq
      %v1159 = vshrl.u32 %v1158, 7
      %v1160 = vsub.s32 3, %v1159
      %v1161 = vrot.slane %v1144, %v1160
      %1166 = vmatprep.subr.mxu0 %v1017
      %1167 = vmatpush1.msra.mxu0 %v1016
      %1168 = vmatprep.subr.mxu0 %v1021
      %1169 = vmatpush1.msra.mxu0 %v1020
      %1170 = vmatprep.subr.mxu0 %v1025
      %1171 = vmatpush1.msra.mxu0 %v1024
      %1172 = vmatprep.subr.mxu0 %v1029
      %1173 = vmatpush1.msra.mxu0 %v1028
      %1174 = vmatprep.subr.mxu0 %v1033
      %1175 = vmatpush1.msra.mxu0 %v1032
      %1176 = vmatprep.subr.mxu0 %v1037
      %1177 = vmatpush1.msra.mxu0 %v1036
      %1178 = vmatprep.subr.mxu0 %v1041
      %1179 = vmatpush1.msra.mxu0 %v1040
      %1180 = vmatprep.subr.mxu0 %v1045
      %1181 = vmatpush1.msra.mxu0 %v1044
      %1182 = vmatprep.subr.mxu0 %v1049
      %1183 = vmatpush1.msra.mxu0 %v1048
      %1184 = vmatprep.subr.mxu0 %v1053
      %1185 = vmatpush1.msra.mxu0 %v1052
      %1186 = vmatprep.subr.mxu0 %v1057
      %1187 = vmatpush1.msra.mxu0 %v1056
      %1188 = vmatprep.subr.mxu0 %v1061
      %1189 = vmatpush1.msra.mxu0 %v1060
      %1190 = vmatprep.subr.mxu0 %v1065
      %1191 = vmatpush1.msra.mxu0 %v1064
      %1192 = vmatprep.subr.mxu0 %v1069
      %1193 = vmatpush1.msra.mxu0 %v1068
      %1194 = vmatprep.subr.mxu0 %v1073
      %1195 = vmatpush1.msra.mxu0 %v1072
      %1196 = vmatprep.subr.mxu0 %v1077
      %1197 = vmatpush1.msra.mxu0 %v1076
      %1198 = vmatprep.subr.mxu0 %v1081
      %1199 = vmatpush1.msra.mxu0 %v1080
      %1200 = vmatprep.subr.mxu0 %v1085
      %1201 = vmatpush1.msra.mxu0 %v1084
      %1202 = vmatprep.subr.mxu0 %v1089
      %1203 = vmatpush1.msra.mxu0 %v1088
      %1204 = vmatprep.subr.mxu0 %v1093
      %1205 = vmatpush1.msra.mxu0 %v1092
      %1206 = vmatprep.subr.mxu0 %v1097
      %1207 = vmatpush1.msra.mxu0 %v1096
      %1208 = vmatprep.subr.mxu0 %v1101
      %1209 = vmatpush1.msra.mxu0 %v1100
      %1210 = vmatprep.subr.mxu0 %v1105
      %1211 = vmatpush1.msra.mxu0 %v1104
      %1212 = vmatprep.subr.mxu0 %v1109
      %1213 = vmatpush1.msra.mxu0 %v1108
      %1214 = vmatprep.subr.mxu0 %v1113
      %1215 = vmatpush1.msra.mxu0 %v1112
      %1216 = vmatprep.subr.mxu0 %v1117
      %1217 = vmatpush1.msra.mxu0 %v1116
      %1218 = vmatprep.subr.mxu0 %v1121
      %1219 = vmatpush1.msra.mxu0 %v1120
      %1220 = vmatprep.subr.mxu0 %v1125
      %1221 = vmatpush1.msra.mxu0 %v1124
      %1222 = vmatprep.subr.mxu0 %v1129
      %1223 = vmatpush1.msra.mxu0 %v1128
      %1224 = vmatprep.subr.mxu0 %v1133
      %1225 = vmatpush1.msra.mxu0 %v1132
      %1226 = vmatprep.subr.mxu0 %v1137
      %1227 = vmatpush1.msra.mxu0 %v1136
      %1228 = vmatprep.subr.mxu0 %v1141
      %1229 = vmatpush1.msra.mxu0 %v1140
      %1230 = vmatprep.mubr.f32.mxu0 %v1014
      %1231 = vmatmul.mubr.f32.gmra.mrb[0].mxu0 %v374
      %v1232 = vpop.f32.mrb[0].mxu0
      %v1233 = vadd.f32 %v1149, %v1232
      %v1234 = vpop.f32.mrb[0].mxu0
      %v1235 = vadd.f32 %v1153, %v1234
      %1236 = vdwg.mxu0
      %1237 = vmatprep.subr.mxu0 %v1019
      %1238 = vmatpush1.msra.mxu0 %v1018
      %1239 = vmatprep.subr.mxu0 %v1023
      %1240 = vmatpush1.msra.mxu0 %v1022
      %1241 = vmatprep.subr.mxu0 %v1027
      %1242 = vmatpush1.msra.mxu0 %v1026
      %1243 = vmatprep.subr.mxu0 %v1031
      %1244 = vmatpush1.msra.mxu0 %v1030
      %1245 = vmatprep.subr.mxu0 %v1035
      %1246 = vmatpush1.msra.mxu0 %v1034
      %1247 = vmatprep.subr.mxu0 %v1039
      %1248 = vmatpush1.msra.mxu0 %v1038
      %1249 = vmatprep.subr.mxu0 %v1043
      %1250 = vmatpush1.msra.mxu0 %v1042
      %1251 = vmatprep.subr.mxu0 %v1047
      %1252 = vmatpush1.msra.mxu0 %v1046
      %1253 = vmatprep.subr.mxu0 %v1051
      %1254 = vmatpush1.msra.mxu0 %v1050
      %1255 = vmatprep.subr.mxu0 %v1055
      %1256 = vmatpush1.msra.mxu0 %v1054
      %1257 = vmatprep.subr.mxu0 %v1059
      %1258 = vmatpush1.msra.mxu0 %v1058
      %1259 = vmatprep.subr.mxu0 %v1063
      %1260 = vmatpush1.msra.mxu0 %v1062
      %1261 = vmatprep.subr.mxu0 %v1067
      %1262 = vmatpush1.msra.mxu0 %v1066
      %1263 = vmatprep.subr.mxu0 %v1071
      %1264 = vmatpush1.msra.mxu0 %v1070
      %1265 = vmatprep.subr.mxu0 %v1075
      %1266 = vmatpush1.msra.mxu0 %v1074
      %1267 = vmatprep.subr.mxu0 %v1079
      %1268 = vmatpush1.msra.mxu0 %v1078
      %1269 = vmatprep.subr.mxu0 %v1083
      %1270 = vmatpush1.msra.mxu0 %v1082
      %1271 = vmatprep.subr.mxu0 %v1087
      %1272 = vmatpush1.msra.mxu0 %v1086
      %1273 = vmatprep.subr.mxu0 %v1091
      %1274 = vmatpush1.msra.mxu0 %v1090
      %1275 = vmatprep.subr.mxu0 %v1095
      %1276 = vmatpush1.msra.mxu0 %v1094
      %1277 = vmatprep.subr.mxu0 %v1099
      %1278 = vmatpush1.msra.mxu0 %v1098
      %1279 = vmatprep.subr.mxu0 %v1103
      %1280 = vmatpush1.msra.mxu0 %v1102
      %1281 = vmatprep.subr.mxu0 %v1107
      %1282 = vmatpush1.msra.mxu0 %v1106
      %1283 = vmatprep.subr.mxu0 %v1111
      %1284 = vmatpush1.msra.mxu0 %v1110
      %1285 = vmatprep.subr.mxu0 %v1115
      %1286 = vmatpush1.msra.mxu0 %v1114
      %1287 = vmatprep.subr.mxu0 %v1119
      %1288 = vmatpush1.msra.mxu0 %v1118
      %1289 = vmatprep.subr.mxu0 %v1123
      %1290 = vmatpush1.msra.mxu0 %v1122
      %1291 = vmatprep.subr.mxu0 %v1127
      %1292 = vmatpush1.msra.mxu0 %v1126
      %1293 = vmatprep.subr.mxu0 %v1131
      %1294 = vmatpush1.msra.mxu0 %v1130
      %1295 = vmatprep.subr.mxu0 %v1135
      %1296 = vmatpush1.msra.mxu0 %v1134
      %1297 = vmatprep.subr.mxu0 %v1139
      %1298 = vmatpush1.msra.mxu0 %v1138
      %1299 = vmatprep.subr.mxu0 %v1143
      %1300 = vmatpush1.msra.mxu0 %v1142
      %1301 = vmatprep.mubr.f32.mxu0 %v1014
      %1302 = vmatmul.mubr.f32.gmra.mrb[0].mxu0 %v374
      %v1303 = vpop.f32.mrb[0].mxu0
      %v1304 = vadd.f32 %v1157, %v1303
      %v1305 = vpop.f32.mrb[0].mxu0
      %v1306 = vadd.f32 %v1161, %v1305
      %1307 = vdwg.mxu0
      %v1308 = vxor.u32 %v1233, 2147483648
      %v1309 = vmul.f32 %v1308, 1.442695
      %v1310 = vpow.pop %v1309
      %v1311 = vadd.f32 %v1310, 1.0
      %v1312 = vrcp.pop %v1311
      %v1313 = vmul.f32 1.0, %v1312
      %v1314 = vxor.u32 %v1235, 2147483648
      %v1315 = vmul.f32 %v1314, 1.442695
      %v1316 = vpow.pop %v1315
      %v1317 = vadd.f32 %v1316, 1.0
      %v1318 = vrcp.pop %v1317
      %v1319 = vmul.f32 1.0, %v1318
      %v1320 = vtanh.pop %v1304
      %v1321 = vxor.u32 %v1306, 2147483648
      %v1322 = vmul.f32 %v1321, 1.442695
      %v1323 = vpow.pop %v1322
      %v1324 = vadd.f32 %v1323, 1.0
      %v1325 = vrcp.pop %v1324
      %v1326 = vmul.f32 1.0, %v1325
      %v1327 = vmul.f32 %v1319, %v1015
      %v1328 = vmul.f32 %v1313, %v1320
      %v1329 = vadd.f32 %v1327, %v1328
      %v1330 = vtanh.pop %v1329
      %v1331 = vmul.f32 %v1326, %v1330
      %v1332 = vld [vmem:[#allocation4] sm:$0xff]
      %v1333 = vld [vmem:[#allocation5] sm:$0xff]
      %v1334 = vld [vmem:[%s9] sm:$0xff]
      %v1335 = vld [vmem:[%s9 + $0x8] sm:$0xff]
      %v1336 = vld [vmem:[%s9 + $0x10] sm:$0xff]
      %v1337 = vld [vmem:[%s9 + $0x18] sm:$0xff]
      %v1338 = vld [vmem:[%s9 + $0x20] sm:$0xff]
      %v1339 = vld [vmem:[%s9 + $0x28] sm:$0xff]
      %v1340 = vld [vmem:[%s9 + $0x30] sm:$0xff]
      %v1341 = vld [vmem:[%s9 + $0x38] sm:$0xff]
      %v1342 = vld [vmem:[%s9 + $0x40] sm:$0xff]
      %v1343 = vld [vmem:[%s9 + $0x48] sm:$0xff]
      %v1344 = vld [vmem:[%s9 + $0x50] sm:$0xff]
      %v1345 = vld [vmem:[%s9 + $0x58] sm:$0xff]
      %v1346 = vld [vmem:[%s9 + $0x60] sm:$0xff]
      %v1347 = vld [vmem:[%s9 + $0x68] sm:$0xff]
      %v1348 = vld [vmem:[%s9 + $0x70] sm:$0xff]
      %v1349 = vld [vmem:[%s9 + $0x78] sm:$0xff]
      %v1350 = vld [vmem:[%s9 + $0x80] sm:$0xff]
      %v1351 = vld [vmem:[%s9 + $0x88] sm:$0xff]
      %v1352 = vld [vmem:[%s9 + $0x90] sm:$0xff]
      %v1353 = vld [vmem:[%s9 + $0x98] sm:$0xff]
      %v1354 = vld [vmem:[%s9 + $0xa0] sm:$0xff]
      %v1355 = vld [vmem:[%s9 + $0xa8] sm:$0xff]
      %v1356 = vld [vmem:[%s9 + $0xb0] sm:$0xff]
      %v1357 = vld [vmem:[%s9 + $0xb8] sm:$0xff]
      %v1358 = vld [vmem:[%s9 + $0xc0] sm:$0xff]
      %v1359 = vld [vmem:[%s9 + $0xc8] sm:$0xff]
      %v1360 = vld [vmem:[%s9 + $0xd0] sm:$0xff]
      %v1361 = vld [vmem:[%s9 + $0xd8] sm:$0xff]
      %v1362 = vld [vmem:[%s9 + $0xe0] sm:$0xff]
      %v1363 = vld [vmem:[%s9 + $0xe8] sm:$0xff]
      %v1364 = vld [vmem:[%s9 + $0xf0] sm:$0xff]
      %v1365 = vld [vmem:[%s9 + $0xf8] sm:$0xff]
      %v1366 = vld [vmem:[%s9 + $0x100] sm:$0xff]
      %v1367 = vld [vmem:[%s9 + $0x108] sm:$0xff]
      %v1368 = vld [vmem:[%s9 + $0x110] sm:$0xff]
      %v1369 = vld [vmem:[%s9 + $0x118] sm:$0xff]
      %v1370 = vld [vmem:[%s9 + $0x120] sm:$0xff]
      %v1371 = vld [vmem:[%s9 + $0x128] sm:$0xff]
      %v1372 = vld [vmem:[%s9 + $0x130] sm:$0xff]
      %v1373 = vld [vmem:[%s9 + $0x138] sm:$0xff]
      %v1374 = vld [vmem:[%s9 + $0x140] sm:$0xff]
      %v1375 = vld [vmem:[%s9 + $0x148] sm:$0xff]
      %v1376 = vld [vmem:[%s9 + $0x150] sm:$0xff]
      %v1377 = vld [vmem:[%s9 + $0x158] sm:$0xff]
      %v1378 = vld [vmem:[%s9 + $0x160] sm:$0xff]
      %v1379 = vld [vmem:[%s9 + $0x168] sm:$0xff]
      %v1380 = vld [vmem:[%s9 + $0x170] sm:$0xff]
      %v1381 = vld [vmem:[%s9 + $0x178] sm:$0xff]
      %v1382 = vld [vmem:[%s9 + $0x180] sm:$0xff]
      %v1383 = vld [vmem:[%s9 + $0x188] sm:$0xff]
      %v1384 = vld [vmem:[%s9 + $0x190] sm:$0xff]
      %v1385 = vld [vmem:[%s9 + $0x198] sm:$0xff]
      %v1386 = vld [vmem:[%s9 + $0x1a0] sm:$0xff]
      %v1387 = vld [vmem:[%s9 + $0x1a8] sm:$0xff]
      %v1388 = vld [vmem:[%s9 + $0x1b0] sm:$0xff]
      %v1389 = vld [vmem:[%s9 + $0x1b8] sm:$0xff]
      %v1390 = vld [vmem:[%s9 + $0x1c0] sm:$0xff]
      %v1391 = vld [vmem:[%s9 + $0x1c8] sm:$0xff]
      %v1392 = vld [vmem:[%s9 + $0x1d0] sm:$0xff]
      %v1393 = vld [vmem:[%s9 + $0x1d8] sm:$0xff]
      %v1394 = vld [vmem:[%s9 + $0x1e0] sm:$0xff]
      %v1395 = vld [vmem:[%s9 + $0x1e8] sm:$0xff]
      %v1396 = vld [vmem:[%s9 + $0x1f0] sm:$0xff]
      %v1397 = vld [vmem:[%s9 + $0x1f8] sm:$0xff]
      %v1398 = vld [vmem:[%s9 + $0x200] sm:$0xff]
      %v1399 = vld [vmem:[%s9 + $0x208] sm:$0xff]
      %v1400 = vld [vmem:[%s9 + $0x210] sm:$0xff]
      %v1401 = vld [vmem:[%s9 + $0x218] sm:$0xff]
      %v1402 = vld [vmem:[%s9 + $0x220] sm:$0xff]
      %v1403 = vld [vmem:[%s9 + $0x228] sm:$0xff]
      %v1404 = vld [vmem:[%s9 + $0x230] sm:$0xff]
      %v1405 = vld [vmem:[%s9 + $0x238] sm:$0xff]
      %v1406 = vld [vmem:[%s9 + $0x240] sm:$0xff]
      %v1407 = vld [vmem:[%s9 + $0x248] sm:$0xff]
      %v1408 = vld [vmem:[%s9 + $0x250] sm:$0xff]
      %v1409 = vld [vmem:[%s9 + $0x258] sm:$0xff]
      %v1410 = vld [vmem:[%s9 + $0x260] sm:$0xff]
      %v1411 = vld [vmem:[%s9 + $0x268] sm:$0xff]
      %v1412 = vld [vmem:[%s9 + $0x270] sm:$0xff]
      %v1413 = vld [vmem:[%s9 + $0x278] sm:$0xff]
      %v1414 = vld [vmem:[%s9 + $0x280] sm:$0xff]
      %v1415 = vld [vmem:[%s9 + $0x288] sm:$0xff]
      %v1416 = vld [vmem:[%s9 + $0x290] sm:$0xff]
      %v1417 = vld [vmem:[%s9 + $0x298] sm:$0xff]
      %v1418 = vld [vmem:[%s9 + $0x2a0] sm:$0xff]
      %v1419 = vld [vmem:[%s9 + $0x2a8] sm:$0xff]
      %v1420 = vld [vmem:[%s9 + $0x2b0] sm:$0xff]
      %v1421 = vld [vmem:[%s9 + $0x2b8] sm:$0xff]
      %v1422 = vld [vmem:[%s9 + $0x2c0] sm:$0xff]
      %v1423 = vld [vmem:[%s9 + $0x2c8] sm:$0xff]
      %v1424 = vld [vmem:[%s9 + $0x2d0] sm:$0xff]
      %v1425 = vld [vmem:[%s9 + $0x2d8] sm:$0xff]
      %v1426 = vld [vmem:[%s9 + $0x2e0] sm:$0xff]
      %v1427 = vld [vmem:[%s9 + $0x2e8] sm:$0xff]
      %v1428 = vld [vmem:[%s9 + $0x2f0] sm:$0xff]
      %v1429 = vld [vmem:[%s9 + $0x2f8] sm:$0xff]
      %v1430 = vld [vmem:[%s9 + $0x300] sm:$0xff]
      %v1431 = vld [vmem:[%s9 + $0x308] sm:$0xff]
      %v1432 = vld [vmem:[%s9 + $0x310] sm:$0xff]
      %v1433 = vld [vmem:[%s9 + $0x318] sm:$0xff]
      %v1434 = vld [vmem:[%s9 + $0x320] sm:$0xff]
      %v1435 = vld [vmem:[%s9 + $0x328] sm:$0xff]
      %v1436 = vld [vmem:[%s9 + $0x330] sm:$0xff]
      %v1437 = vld [vmem:[%s9 + $0x338] sm:$0xff]
      %v1438 = vld [vmem:[%s9 + $0x340] sm:$0xff]
      %v1439 = vld [vmem:[%s9 + $0x348] sm:$0xff]
      %v1440 = vld [vmem:[%s9 + $0x350] sm:$0xff]
      %v1441 = vld [vmem:[%s9 + $0x358] sm:$0xff]
      %v1442 = vld [vmem:[%s9 + $0x360] sm:$0xff]
      %v1443 = vld [vmem:[%s9 + $0x368] sm:$0xff]
      %v1444 = vld [vmem:[%s9 + $0x370] sm:$0xff]
      %v1445 = vld [vmem:[%s9 + $0x378] sm:$0xff]
      %v1446 = vld [vmem:[%s9 + $0x380] sm:$0xff]
      %v1447 = vld [vmem:[%s9 + $0x388] sm:$0xff]
      %v1448 = vld [vmem:[%s9 + $0x390] sm:$0xff]
      %v1449 = vld [vmem:[%s9 + $0x398] sm:$0xff]
      %v1450 = vld [vmem:[%s9 + $0x3a0] sm:$0xff]
      %v1451 = vld [vmem:[%s9 + $0x3a8] sm:$0xff]
      %v1452 = vld [vmem:[%s9 + $0x3b0] sm:$0xff]
      %v1453 = vld [vmem:[%s9 + $0x3b8] sm:$0xff]
      %v1454 = vld [vmem:[%s9 + $0x3c0] sm:$0xff]
      %v1455 = vld [vmem:[%s9 + $0x3c8] sm:$0xff]
      %v1456 = vld [vmem:[%s9 + $0x3d0] sm:$0xff]
      %v1457 = vld [vmem:[%s9 + $0x3d8] sm:$0xff]
      %v1458 = vld [vmem:[%s9 + $0x3e0] sm:$0xff]
      %v1459 = vld [vmem:[%s9 + $0x3e8] sm:$0xff]
      %v1460 = vld [vmem:[%s9 + $0x3f0] sm:$0xff]
      %v1461 = vld [vmem:[%s9 + $0x3f8] sm:$0xff]
      %v1462 = vld [vmem:[%s10] sm:$0xf]
      %v1464 = vlaneseq
      %v1465 = vshrl.u32 %v1464, 7
      %v1466 = vsub.s32 0, %v1465
      %v1467 = vrot.slane %v1462, %v1466
      %v1468 = vlaneseq
      %v1469 = vshrl.u32 %v1468, 7
      %v1470 = vsub.s32 1, %v1469
      %v1471 = vrot.slane %v1462, %v1470
      %v1472 = vlaneseq
      %v1473 = vshrl.u32 %v1472, 7
      %v1474 = vsub.s32 2, %v1473
      %v1475 = vrot.slane %v1462, %v1474
      %v1476 = vlaneseq
      %v1477 = vshrl.u32 %v1476, 7
      %v1478 = vsub.s32 3, %v1477
      %v1479 = vrot.slane %v1462, %v1478
      %1484 = vmatprep.subr.mxu0 %v1335
      %1485 = vmatpush1.msra.mxu0 %v1334
      %1486 = vmatprep.subr.mxu0 %v1339
      %1487 = vmatpush1.msra.mxu0 %v1338
      %1488 = vmatprep.subr.mxu0 %v1343
      %1489 = vmatpush1.msra.mxu0 %v1342
      %1490 = vmatprep.subr.mxu0 %v1347
      %1491 = vmatpush1.msra.mxu0 %v1346
      %1492 = vmatprep.subr.mxu0 %v1351
      %1493 = vmatpush1.msra.mxu0 %v1350
      %1494 = vmatprep.subr.mxu0 %v1355
      %1495 = vmatpush1.msra.mxu0 %v1354
      %1496 = vmatprep.subr.mxu0 %v1359
      %1497 = vmatpush1.msra.mxu0 %v1358
      %1498 = vmatprep.subr.mxu0 %v1363
      %1499 = vmatpush1.msra.mxu0 %v1362
      %1500 = vmatprep.subr.mxu0 %v1367
      %1501 = vmatpush1.msra.mxu0 %v1366
      %1502 = vmatprep.subr.mxu0 %v1371
      %1503 = vmatpush1.msra.mxu0 %v1370
      %1504 = vmatprep.subr.mxu0 %v1375
      %1505 = vmatpush1.msra.mxu0 %v1374
      %1506 = vmatprep.subr.mxu0 %v1379
      %1507 = vmatpush1.msra.mxu0 %v1378
      %1508 = vmatprep.subr.mxu0 %v1383
      %1509 = vmatpush1.msra.mxu0 %v1382
      %1510 = vmatprep.subr.mxu0 %v1387
      %1511 = vmatpush1.msra.mxu0 %v1386
      %1512 = vmatprep.subr.mxu0 %v1391
      %1513 = vmatpush1.msra.mxu0 %v1390
      %1514 = vmatprep.subr.mxu0 %v1395
      %1515 = vmatpush1.msra.mxu0 %v1394
      %1516 = vmatprep.subr.mxu0 %v1399
      %1517 = vmatpush1.msra.mxu0 %v1398
      %1518 = vmatprep.subr.mxu0 %v1403
      %1519 = vmatpush1.msra.mxu0 %v1402
      %1520 = vmatprep.subr.mxu0 %v1407
      %1521 = vmatpush1.msra.mxu0 %v1406
      %1522 = vmatprep.subr.mxu0 %v1411
      %1523 = vmatpush1.msra.mxu0 %v1410
      %1524 = vmatprep.subr.mxu0 %v1415
      %1525 = vmatpush1.msra.mxu0 %v1414
      %1526 = vmatprep.subr.mxu0 %v1419
      %1527 = vmatpush1.msra.mxu0 %v1418
      %1528 = vmatprep.subr.mxu0 %v1423
      %1529 = vmatpush1.msra.mxu0 %v1422
      %1530 = vmatprep.subr.mxu0 %v1427
      %1531 = vmatpush1.msra.mxu0 %v1426
      %1532 = vmatprep.subr.mxu0 %v1431
      %1533 = vmatpush1.msra.mxu0 %v1430
      %1534 = vmatprep.subr.mxu0 %v1435
      %1535 = vmatpush1.msra.mxu0 %v1434
      %1536 = vmatprep.subr.mxu0 %v1439
      %1537 = vmatpush1.msra.mxu0 %v1438
      %1538 = vmatprep.subr.mxu0 %v1443
      %1539 = vmatpush1.msra.mxu0 %v1442
      %1540 = vmatprep.subr.mxu0 %v1447
      %1541 = vmatpush1.msra.mxu0 %v1446
      %1542 = vmatprep.subr.mxu0 %v1451
      %1543 = vmatpush1.msra.mxu0 %v1450
      %1544 = vmatprep.subr.mxu0 %v1455
      %1545 = vmatpush1.msra.mxu0 %v1454
      %1546 = vmatprep.subr.mxu0 %v1459
      %1547 = vmatpush1.msra.mxu0 %v1458
      %1548 = vmatprep.mubr.f32.mxu0 %v1332
      %1549 = vmatmul.mubr.f32.gmra.mrb[0].mxu0 %v1331
      %v1550 = vpop.f32.mrb[0].mxu0
      %v1551 = vadd.f32 %v1467, %v1550
      %v1552 = vpop.f32.mrb[0].mxu0
      %v1553 = vadd.f32 %v1471, %v1552
      %1554 = vdwg.mxu0
      %1555 = vmatprep.subr.mxu0 %v1337
      %1556 = vmatpush1.msra.mxu0 %v1336
      %1557 = vmatprep.subr.mxu0 %v1341
      %1558 = vmatpush1.msra.mxu0 %v1340
      %1559 = vmatprep.subr.mxu0 %v1345
      %1560 = vmatpush1.msra.mxu0 %v1344
      %1561 = vmatprep.subr.mxu0 %v1349
      %1562 = vmatpush1.msra.mxu0 %v1348
      %1563 = vmatprep.subr.mxu0 %v1353
      %1564 = vmatpush1.msra.mxu0 %v1352
      %1565 = vmatprep.subr.mxu0 %v1357
      %1566 = vmatpush1.msra.mxu0 %v1356
      %1567 = vmatprep.subr.mxu0 %v1361
      %1568 = vmatpush1.msra.mxu0 %v1360
      %1569 = vmatprep.subr.mxu0 %v1365
      %1570 = vmatpush1.msra.mxu0 %v1364
      %1571 = vmatprep.subr.mxu0 %v1369
      %1572 = vmatpush1.msra.mxu0 %v1368
      %1573 = vmatprep.subr.mxu0 %v1373
      %1574 = vmatpush1.msra.mxu0 %v1372
      %1575 = vmatprep.subr.mxu0 %v1377
      %1576 = vmatpush1.msra.mxu0 %v1376
      %1577 = vmatprep.subr.mxu0 %v1381
      %1578 = vmatpush1.msra.mxu0 %v1380
      %1579 = vmatprep.subr.mxu0 %v1385
      %1580 = vmatpush1.msra.mxu0 %v1384
      %1581 = vmatprep.subr.mxu0 %v1389
      %1582 = vmatpush1.msra.mxu0 %v1388
      %1583 = vmatprep.subr.mxu0 %v1393
      %1584 = vmatpush1.msra.mxu0 %v1392
      %1585 = vmatprep.subr.mxu0 %v1397
      %1586 = vmatpush1.msra.mxu0 %v1396
      %1587 = vmatprep.subr.mxu0 %v1401
      %1588 = vmatpush1.msra.mxu0 %v1400
      %1589 = vmatprep.subr.mxu0 %v1405
      %1590 = vmatpush1.msra.mxu0 %v1404
      %1591 = vmatprep.subr.mxu0 %v1409
      %1592 = vmatpush1.msra.mxu0 %v1408
      %1593 = vmatprep.subr.mxu0 %v1413
      %1594 = vmatpush1.msra.mxu0 %v1412
      %1595 = vmatprep.subr.mxu0 %v1417
      %1596 = vmatpush1.msra.mxu0 %v1416
      %1597 = vmatprep.subr.mxu0 %v1421
      %1598 = vmatpush1.msra.mxu0 %v1420
      %1599 = vmatprep.subr.mxu0 %v1425
      %1600 = vmatpush1.msra.mxu0 %v1424
      %1601 = vmatprep.subr.mxu0 %v1429
      %1602 = vmatpush1.msra.mxu0 %v1428
      %1603 = vmatprep.subr.mxu0 %v1433
      %1604 = vmatpush1.msra.mxu0 %v1432
      %1605 = vmatprep.subr.mxu0 %v1437
      %1606 = vmatpush1.msra.mxu0 %v1436
      %1607 = vmatprep.subr.mxu0 %v1441
      %1608 = vmatpush1.msra.mxu0 %v1440
      %1609 = vmatprep.subr.mxu0 %v1445
      %1610 = vmatpush1.msra.mxu0 %v1444
      %1611 = vmatprep.subr.mxu0 %v1449
      %1612 = vmatpush1.msra.mxu0 %v1448
      %1613 = vmatprep.subr.mxu0 %v1453
      %1614 = vmatpush1.msra.mxu0 %v1452
      %1615 = vmatprep.subr.mxu0 %v1457
      %1616 = vmatpush1.msra.mxu0 %v1456
      %1617 = vmatprep.subr.mxu0 %v1461
      %1618 = vmatpush1.msra.mxu0 %v1460
      %1619 = vmatprep.mubr.f32.mxu0 %v1332
      %1620 = vmatmul.mubr.f32.gmra.mrb[0].mxu0 %v1331
      %v1621 = vpop.f32.mrb[0].mxu0
      %v1622 = vadd.f32 %v1475, %v1621
      %v1623 = vpop.f32.mrb[0].mxu0
      %v1624 = vadd.f32 %v1479, %v1623
      %1625 = vdwg.mxu0
      %v1626 = vxor.u32 %v1551, 2147483648
      %v1627 = vmul.f32 %v1626, 1.442695
      %v1628 = vpow.pop %v1627
      %v1629 = vadd.f32 %v1628, 1.0
      %v1630 = vrcp.pop %v1629
      %v1631 = vmul.f32 1.0, %v1630
      %v1632 = vxor.u32 %v1553, 2147483648
      %v1633 = vmul.f32 %v1632, 1.442695
      %v1634 = vpow.pop %v1633
      %v1635 = vadd.f32 %v1634, 1.0
      %v1636 = vrcp.pop %v1635
      %v1637 = vmul.f32 1.0, %v1636
      %v1638 = vtanh.pop %v1622
      %v1639 = vxor.u32 %v1624, 2147483648
      %v1640 = vmul.f32 %v1639, 1.442695
      %v1641 = vpow.pop %v1640
      %v1642 = vadd.f32 %v1641, 1.0
      %v1643 = vrcp.pop %v1642
      %v1644 = vmul.f32 1.0, %v1643
      %v1645 = vmul.f32 %v1637, %v1333
      %v1646 = vmul.f32 %v1631, %v1638
      %v1647 = vadd.f32 %v1645, %v1646
      %v1648 = vtanh.pop %v1647
      %v1649 = vmul.f32 %v1644, %v1648
      %1650 = vst [vmem:[#allocation2] sm:$0xff] %v1331
      %1651 = vst [vmem:[#allocation3] sm:$0xff] %v1329
      %1652 = vst [vmem:[#allocation4] sm:$0xff] %v1649
      %1653 = vst [vmem:[#allocation5] sm:$0xff] %v1647
      %v1654 = vld [vmem:[%s11] sm:$0xff]
      %v1655 = vld [vmem:[%s11 + $0x8] sm:$0xff]
      %v1656 = vld [vmem:[%s11 + $0x10] sm:$0xff]
      %v1657 = vld [vmem:[%s11 + $0x18] sm:$0xff]
      %v1658 = vld [vmem:[%s11 + $0x20] sm:$0xff]
      %v1659 = vld [vmem:[%s11 + $0x28] sm:$0xff]
      %v1660 = vld [vmem:[%s11 + $0x30] sm:$0xff]
      %v1661 = vld [vmem:[%s11 + $0x38] sm:$0xff]
      %v1662 = vld [vmem:[%s11 + $0x40] sm:$0xff]
      %v1663 = vld [vmem:[%s11 + $0x48] sm:$0xff]
      %v1664 = vld [vmem:[%s11 + $0x50] sm:$0xff]
      %v1665 = vld [vmem:[%s11 + $0x58] sm:$0xff]
      %v1666 = vld [vmem:[%s11 + $0x60] sm:$0xff]
      %v1667 = vld [vmem:[%s11 + $0x68] sm:$0xff]
      %v1668 = vld [vmem:[%s11 + $0x70] sm:$0xff]
      %v1669 = vld [vmem:[%s11 + $0x78] sm:$0xff]
      %v1670 = vld [vmem:[#allocation6] sm:$0x1]
      %v1672 = vlaneseq
      %v1673 = vshrl.u32 %v1672, 7
      %v1674 = vsub.s32 0, %v1673
      %v1675 = vrot.slane %v1670, %v1674
      %1677 = vmatprep.subr.mxu0 0.0
      %1678 = vmatpush1.msra.mxu0 %v1654
      %1679 = vmatprep.subr.mxu0 0.0
      %1680 = vmatpush1.msra.mxu0 %v1655
      %1681 = vmatprep.subr.mxu0 0.0
      %1682 = vmatpush1.msra.mxu0 %v1656
      %1683 = vmatprep.subr.mxu0 0.0
      %1684 = vmatpush1.msra.mxu0 %v1657
      %1685 = vmatprep.subr.mxu0 0.0
      %1686 = vmatpush1.msra.mxu0 %v1658
      %1687 = vmatprep.subr.mxu0 0.0
      %1688 = vmatpush1.msra.mxu0 %v1659
      %1689 = vmatprep.subr.mxu0 0.0
      %1690 = vmatpush1.msra.mxu0 %v1660
      %1691 = vmatprep.subr.mxu0 0.0
      %1692 = vmatpush1.msra.mxu0 %v1661
      %1693 = vmatprep.subr.mxu0 0.0
      %1694 = vmatpush1.msra.mxu0 %v1662
      %1695 = vmatprep.subr.mxu0 0.0
      %1696 = vmatpush1.msra.mxu0 %v1663
      %1697 = vmatprep.subr.mxu0 0.0
      %1698 = vmatpush1.msra.mxu0 %v1664
      %1699 = vmatprep.subr.mxu0 0.0
      %1700 = vmatpush1.msra.mxu0 %v1665
      %1701 = vmatprep.subr.mxu0 0.0
      %1702 = vmatpush1.msra.mxu0 %v1666
      %1703 = vmatprep.subr.mxu0 0.0
      %1704 = vmatpush1.msra.mxu0 %v1667
      %1705 = vmatprep.subr.mxu0 0.0
      %1706 = vmatpush1.msra.mxu0 %v1668
      %1707 = vmatprep.subr.mxu0 0.0
      %1708 = vmatpush1.msra.mxu0 %v1669
      %1709 = vmatprep.subr.mxu0 0.0
      %1710 = vmatpush1.msra.mxu0 0.0
      %1711 = vmatprep.subr.mxu0 0.0
      %1712 = vmatpush1.msra.mxu0 0.0
      %1713 = vmatprep.subr.mxu0 0.0
      %1714 = vmatpush1.msra.mxu0 0.0
      %1715 = vmatprep.subr.mxu0 0.0
      %1716 = vmatpush1.msra.mxu0 0.0
      %1717 = vmatprep.subr.mxu0 0.0
      %1718 = vmatpush1.msra.mxu0 0.0
      %1719 = vmatprep.subr.mxu0 0.0
      %1720 = vmatpush1.msra.mxu0 0.0
      %1721 = vmatprep.subr.mxu0 0.0
      %1722 = vmatpush1.msra.mxu0 0.0
      %1723 = vmatprep.subr.mxu0 0.0
      %1724 = vmatpush1.msra.mxu0 0.0
      %1725 = vmatprep.subr.mxu0 0.0
      %1726 = vmatpush1.msra.mxu0 0.0
      %1727 = vmatprep.subr.mxu0 0.0
      %1728 = vmatpush1.msra.mxu0 0.0
      %1729 = vmatprep.subr.mxu0 0.0
      %1730 = vmatpush1.msra.mxu0 0.0
      %1731 = vmatprep.subr.mxu0 0.0
      %1732 = vmatpush1.msra.mxu0 0.0
      %1733 = vmatprep.subr.mxu0 0.0
      %1734 = vmatpush1.msra.mxu0 0.0
      %1735 = vmatprep.subr.mxu0 0.0
      %1736 = vmatpush1.msra.mxu0 0.0
      %1737 = vmatprep.subr.mxu0 0.0
      %1738 = vmatpush1.msra.mxu0 0.0
      %1739 = vmatprep.subr.mxu0 0.0
      %1740 = vmatpush1.msra.mxu0 0.0
      %1741 = vmatprep.mubr.f32.mxu0 0.0
      %1742 = vmatmul.mubr.f32.gmra.mrb[0].mxu0 %v1649
      %v1743 = vpop.f32.mrb[0].mxu0
      %v1744 = vadd.f32 %v1675, %v1743
      %v1745 = vpop.f32.mrb[0].mxu0
      %1746 = vdwg.mxu0
      %vm1747 = vcmp.eq.s32.totalorder %v65, %v261
      %v1748 = vld [vmem:[#allocation7] sm:$0xff]
      %1750 = vset.pattern.permute.xlu0 0
      %1751 = vperm.xlu0 %1750, %v1744
      %v1752 = vpop.permute.xlu0 %1751
      %v1754 = vsel %vm1747, %v1752, %v1748
      %1755 = vst.msk [vmem:[#allocation7] sm:$0xff] %vm51, %v1754
    $region58: #{latent_to_profile_decoder.1} parent=1 // loop_footer
      %s71 = sadd.s32 1, %s67
    $region59: #{latent_to_profile_decoder.1} parent=1 // loop_footer_branch
      %66 = sbr.rel target = $region55
    $region60: #{latent_to_profile_decoder.1} parent=1 // loop_exit
      _
    // Predicated region
    $region61: #{latent_to_profile_decoder.1} parent=1 // pred_check
      _
    $region62: #{latent_to_profile_decoder.1} parent=1 // pred_check_branch
      %1757 = sbr.rel (0) target = $region64
    $region63: #{latent_to_profile_decoder.1} parent=1 // pred_region
      %s1759 = ssub.s32 128, 128
      %1760 = vsyncadd [#allocation8], %s1759
      %s1762 = sshll.u32 [#allocation7], 4
      %s1763 = int_to_ptr.vmem [resolvable:$true] %s1762
      %1765 = dma.vmem_to_hbm [thread:$0]  %s1763, 128, %s13, [#allocation8]
    $region64: #{latent_to_profile_decoder.1} parent=1 // pred_fallthru
      _
    // Predicated region
    $region65: #{latent_to_profile_decoder.1} parent=1 // pred_check
      _
    $region66: #{latent_to_profile_decoder.1} parent=1 // pred_check_branch
      %1767 = sbr.rel (0) target = $region68
    $region67: #{latent_to_profile_decoder.1} parent=1 // pred_region
      %1768 = dma.done [#allocation8], 128
    $region68: #{latent_to_profile_decoder.1} parent=1 // pred_fallthru
      _
    %1769 = vsyncpa [#allocation8], 1

</llo_original>
